<compile_context>
chip_gen: v5e
topology: v5e:2x2
jax: 0.10.0
libtpu: 0.0.40
codegen_flags: <defaults>
</compile_context>

<pallas_src>
import jax
import jax.numpy as jnp
from jax.experimental import pallas as pl
from jax.experimental.pallas import tpu as pltpu


def _dwt_kernel(x_ref, o_ref):
    """x_ref: (tc, th, 2*W) row-pair slabs; o_ref: (4, tc, th, W/2) bands.

    Each block "row" is one (even image row | odd image row) pair, so the row
    parity split is two contiguous lane slices.  Column parity is an in-vreg
    reshape + minor index.  Band order is [LL, HL, LH, HH].
    """
    two_w = x_ref.shape[-1]
    W = two_w // 2
    Wh = W // 2

    v = x_ref[...]
    row_e = v[:, :, :W].astype(jnp.float32)   # even image rows
    row_o = v[:, :, W:].astype(jnp.float32)   # odd  image rows

    s = row_e + row_o                          # even + odd row
    d = row_o - row_e                          # odd - even row

    tc, th = s.shape[0], s.shape[1]
    s4 = s.reshape(tc, th, Wh, 2)              # split interleaved columns
    d4 = d.reshape(tc, th, Wh, 2)
    s_ev = s4[..., 0]                          # even cols: 2*(x1 + x2)
    s_od = s4[..., 1]                          # odd  cols: 2*(x3 + x4)
    d_ev = d4[..., 0]                          # even cols: 2*(x2 - x1)
    d_od = d4[..., 1]                          # odd  cols: 2*(x4 - x3)

    dt = o_ref.dtype
    o_ref[0] = ((s_ev + s_od) * 0.5).astype(dt)   # LL =  x1 + x2 + x3 + x4
    o_ref[1] = ((s_od - s_ev) * 0.5).astype(dt)   # HL = -x1 - x2 + x3 + x4
    o_ref[2] = ((d_ev + d_od) * 0.5).astype(dt)   # LH = -x1 + x2 - x3 + x4
    o_ref[3] = ((d_od - d_ev) * 0.5).astype(dt)   # HH =  x1 - x2 - x3 + x4


def _round_up(a, b):
    return (a + b - 1) // b * b


def _vmem_capacity_bytes():
    try:
        info = pltpu.get_tpu_info()
        cap = int(getattr(info, "vmem_capacity_bytes", 0))
        if cap > 0:
            return cap
    except Exception:
        pass
    return 64 * 1024 * 1024        # conservative (v7x-sized) fallback


def _pick_tiles(C, Hh, W, itemsize, min_sub, budget):
    """Pick (tc, th) so the double-buffered block footprint (+ f32 temps) fits budget."""
    Wh = W // 2
    lane = 128

    def footprint(tc, th):
        th_pad = _round_up(max(th, 1), min_sub)
        in_b = tc * th_pad * _round_up(2 * W, lane) * itemsize       # (tc, th, 2W) in block
        out_b = 4 * tc * th_pad * _round_up(Wh, lane) * itemsize     # (4, tc, th, Wh) out block
        tmp_b = 6 * tc * th_pad * _round_up(W, lane) * 4             # f32 temps + shuffle scratch
        return 2 * (in_b + out_b) + tmp_b                            # x2: double buffering

    # Rows first.
    if Hh <= min_sub:
        th = Hh
    else:
        per_row = footprint(1, min_sub) / float(min_sub)
        th_fit = int(budget // per_row)
        if th_fit >= Hh:
            th = Hh
        else:
            th_fit = max(min_sub, (th_fit // min_sub) * min_sub)
            th = None
            cand = th_fit
            while cand >= min_sub:                 # prefer a divisor of Hh (no edge blocks)
                if Hh % cand == 0:
                    th = cand
                    break
                cand -= min_sub
            if th is None or th * 2 < th_fit:      # no decent divisor: accept a partial edge
                th = th_fit

    # Channels second (only once a whole per-channel plane fits).
    if th == Hh:
        per_ch = max(1, footprint(1, Hh))
        tc_fit = max(1, min(C, budget // per_ch))
        tc = int(tc_fit)
        while tc > 1 and C % tc != 0:              # prefer a divisor of C
            tc -= 1
        if tc * 2 < tc_fit:                        # divisor too small: accept a partial edge
            tc = int(tc_fit)
    else:
        tc = 1

    return int(tc), int(th), int(footprint(int(tc), int(th)))


def dwt_pallas(x, *, vmem_budget_bytes=None):
    """Haar DWT. x: (B, C, H, W) -> (B, 4*C, H/2, W/2), band order [LL, HL, LH, HH]."""
    B, C, H, W = x.shape
    assert H % 2 == 0 and W % 2 == 0, "H and W must be even"
    Hh, Wh = H // 2, W // 2
    itemsize = x.dtype.itemsize
    min_sub = 8 if itemsize >= 4 else 8 * (4 // itemsize)   # sublane granule per dtype

    cap = _vmem_capacity_bytes()
    if vmem_budget_bytes is None:
        budget = min(max(cap // 3, 8 * 1024 * 1024), 48 * 1024 * 1024)
    else:
        budget = int(vmem_budget_bytes)
    budget = max(1, min(budget, int(cap * 0.45)))   # caller budget can never outgrow the limit

    tc, th, fp = _pick_tiles(C, Hh, W, itemsize, min_sub, budget)

    # Megacore (v7x has 2 TCs): make sure there are >= 2 grid steps to shard.
    if B * pl.cdiv(C, tc) * pl.cdiv(Hh, th) < 2:
        if C >= 2:
            tc = (C + 1) // 2
        elif Hh >= 2 * min_sub:
            th = max(min_sub, ((Hh // 2) // min_sub) * min_sub)
        # (splitting only shrinks the footprint, so `fp` stays a safe upper bound)

    vmem_limit = int(min(cap * 0.85, max(2 * fp, 16 * 1024 * 1024)))

    # Free, contiguous reshape: each row of xr is [even image row | odd image row].
    xr = x.reshape(B, C, Hh, 2 * W)

    grid = (B, pl.cdiv(C, tc), pl.cdiv(Hh, th))

    in_spec = pl.BlockSpec((None, tc, th, 2 * W),
                           lambda b, ci, hi: (b, ci, hi, 0))
    out_spec = pl.BlockSpec((None, 4, tc, th, Wh),
                            lambda b, ci, hi: (b, 0, ci, hi, 0))

    out = pl.pallas_call(
        _dwt_kernel,
        out_shape=jax.ShapeDtypeStruct((B, 4, C, Hh, Wh), x.dtype),
        grid_spec=pltpu.PrefetchScalarGridSpec(
            num_scalar_prefetch=0,
            grid=grid,
            in_specs=[in_spec],
            out_specs=out_spec,
        ),
        compiler_params=pltpu.CompilerParams(
            dimension_semantics=("parallel", "parallel", "parallel"),
            vmem_limit_bytes=vmem_limit,
        ),
    )(xr)

    # (B, 4, C, Hh, Wh) -> (B, 4*C, Hh, Wh) is a contiguous (free) merge,
    # matching torch.cat((LL, HL, LH, HH), dim=1).
    return out.reshape(B, 4 * C, Hh, Wh)


def _dwt_reference(x):
    """Pure-JAX reference mirroring the PyTorch dwt_init."""
    x01 = x[:, :, 0::2, :] / 2
    x02 = x[:, :, 1::2, :] / 2
    x1 = x01[:, :, :, 0::2]
    x2 = x02[:, :, :, 0::2]
    x3 = x01[:, :, :, 1::2]
    x4 = x02[:, :, :, 1::2]
    x_LL = x1 + x2 + x3 + x4
    x_HL = -x1 - x2 + x3 + x4
    x_LH = -x1 + x2 - x3 + x4
    x_HH = x1 - x2 - x3 + x4
    return jnp.concatenate((x_LL, x_HL, x_LH, x_HH), axis=1)


if __name__ == "__main__":
    key = jax.random.PRNGKey(0)
    key_a, key_b = jax.random.split(key)

    # Primary check: small shape matching the module spec.
    B, C, H, W = 2, 4, 16, 16
    x = jax.random.normal(key_a, (B, C, H, W), dtype=jnp.float32)
    out = jax.block_until_ready(dwt_pallas(x))
    ref = _dwt_reference(x)
    assert out.shape == (B, 4 * C, H // 2, W // 2), out.shape
    assert jnp.allclose(out, ref, atol=1e-5, rtol=1e-5), "mismatch vs reference"

    # Secondary check: tiny budget forces a multi-step (2, 3, 2) grid and the
    # tiled, double-buffered path (block = (1, 8, 512) in, (4, 1, 8, 128) out).
    x2 = jax.random.normal(key_b, (2, 3, 32, 256), dtype=jnp.float32)
    out2 = jax.block_until_ready(dwt_pallas(x2, vmem_budget_bytes=16 * 1024))
    ref2 = _dwt_reference(x2)
    assert out2.shape == (2, 12, 16, 128), out2.shape
    assert jnp.allclose(out2, ref2, atol=1e-5, rtol=1e-5), "mismatch vs reference (tiled)"

    print("KERNEL_OK")
</pallas_src>

<mosaic_0001>
module attributes {stable_mosaic.version = 11 : i64} {
  func.func @_dwt_kernel(%arg0: i32, %arg1: i32, %arg2: i32, %arg3: memref<1x4x8x32xf32, #tpu.memory_space<vmem>>, %arg4: memref<1x4x4x8x8xf32, #tpu.memory_space<vmem>>) attributes {dimension_semantics = [#tpu.dimension_semantics<parallel>, #tpu.dimension_semantics<parallel>, #tpu.dimension_semantics<parallel>], iteration_bounds = array<i64: 2, 1, 1>, scalar_prefetch = 0 : i64, scratch_operands = 0 : i64, tpu.core_type = #tpu.core_type<tc>, window_params = [{transform_indices = @transform_0, window_bounds = array<i64: 1, 4, 8, 32>}, {transform_indices = @transform_1, window_bounds = array<i64: 1, 4, 4, 8, 8>}]} {
    %c0 = arith.constant 0 : index
    %c0_0 = arith.constant 0 : index
    %c0_1 = arith.constant 0 : index
    %c0_2 = arith.constant 0 : index
    %0 = vector.load %arg3[%c0, %c0_0, %c0_1, %c0_2] : memref<1x4x8x32xf32, #tpu.memory_space<vmem>>, vector<1x4x8x32xf32>
    %1 = vector.shape_cast %0 : vector<1x4x8x32xf32> to vector<4x8x32xf32>
    %2 = vector.extract_strided_slice %1 {offsets = [0, 0, 0], sizes = [4, 8, 16], strides = [1, 1, 1]} : vector<4x8x32xf32> to vector<4x8x16xf32>
    %3 = vector.extract_strided_slice %1 {offsets = [0, 0, 16], sizes = [4, 8, 16], strides = [1, 1, 1]} : vector<4x8x32xf32> to vector<4x8x16xf32>
    %4 = arith.addf %2, %3 : vector<4x8x16xf32>
    %5 = arith.subf %3, %2 : vector<4x8x16xf32>
    %6 = vector.shape_cast %4 : vector<4x8x16xf32> to vector<4x8x8x2xf32>
    %7 = vector.shape_cast %5 : vector<4x8x16xf32> to vector<4x8x8x2xf32>
    %8 = vector.extract_strided_slice %6 {offsets = [0, 0, 0, 0], sizes = [4, 8, 8, 1], strides = [1, 1, 1, 1]} : vector<4x8x8x2xf32> to vector<4x8x8x1xf32>
    %9 = vector.shape_cast %8 : vector<4x8x8x1xf32> to vector<4x8x8xf32>
    %10 = vector.extract_strided_slice %6 {offsets = [0, 0, 0, 1], sizes = [4, 8, 8, 1], strides = [1, 1, 1, 1]} : vector<4x8x8x2xf32> to vector<4x8x8x1xf32>
    %11 = vector.shape_cast %10 : vector<4x8x8x1xf32> to vector<4x8x8xf32>
    %12 = vector.extract_strided_slice %7 {offsets = [0, 0, 0, 0], sizes = [4, 8, 8, 1], strides = [1, 1, 1, 1]} : vector<4x8x8x2xf32> to vector<4x8x8x1xf32>
    %13 = vector.shape_cast %12 : vector<4x8x8x1xf32> to vector<4x8x8xf32>
    %14 = vector.extract_strided_slice %7 {offsets = [0, 0, 0, 1], sizes = [4, 8, 8, 1], strides = [1, 1, 1, 1]} : vector<4x8x8x2xf32> to vector<4x8x8x1xf32>
    %15 = vector.shape_cast %14 : vector<4x8x8x1xf32> to vector<4x8x8xf32>
    %16 = arith.addf %9, %11 : vector<4x8x8xf32>
    %cst = arith.constant 5.000000e-01 : f32
    %17 = vector.broadcast %cst : f32 to vector<4x8x8xf32>
    %18 = arith.mulf %16, %17 : vector<4x8x8xf32>
    %c0_3 = arith.constant 0 : index
    %c0_4 = arith.constant 0 : index
    %c0_5 = arith.constant 0 : index
    %c0_6 = arith.constant 0 : index
    %c0_7 = arith.constant 0 : index
    %19 = vector.load %arg4[%c0_3, %c0_4, %c0_5, %c0_6, %c0_7] : memref<1x4x4x8x8xf32, #tpu.memory_space<vmem>>, vector<1x1x4x8x8xf32>
    %20 = vector.shape_cast %19 : vector<1x1x4x8x8xf32> to vector<4x8x8xf32>
    %21 = vector.shape_cast %18 : vector<4x8x8xf32> to vector<1x1x4x8x8xf32>
    tpu.vector_store %arg4[%c0_3, %c0_4, %c0_5, %c0_6, %c0_7], %21 {strides = array<i32>} : memref<1x4x4x8x8xf32, #tpu.memory_space<vmem>>, vector<1x1x4x8x8xf32>,
    %22 = arith.subf %11, %9 : vector<4x8x8xf32>
    %cst_8 = arith.constant 5.000000e-01 : f32
    %23 = vector.broadcast %cst_8 : f32 to vector<4x8x8xf32>
    %24 = arith.mulf %22, %23 : vector<4x8x8xf32>
    %c0_9 = arith.constant 0 : index
    %c1 = arith.constant 1 : index
    %c0_10 = arith.constant 0 : index
    %c0_11 = arith.constant 0 : index
    %c0_12 = arith.constant 0 : index
    %25 = vector.load %arg4[%c0_9, %c1, %c0_10, %c0_11, %c0_12] : memref<1x4x4x8x8xf32, #tpu.memory_space<vmem>>, vector<1x1x4x8x8xf32>
    %26 = vector.shape_cast %25 : vector<1x1x4x8x8xf32> to vector<4x8x8xf32>
    %27 = vector.shape_cast %24 : vector<4x8x8xf32> to vector<1x1x4x8x8xf32>
    tpu.vector_store %arg4[%c0_9, %c1, %c0_10, %c0_11, %c0_12], %27 {strides = array<i32>} : memref<1x4x4x8x8xf32, #tpu.memory_space<vmem>>, vector<1x1x4x8x8xf32>,
    %28 = arith.addf %13, %15 : vector<4x8x8xf32>
    %cst_13 = arith.constant 5.000000e-01 : f32
    %29 = vector.broadcast %cst_13 : f32 to vector<4x8x8xf32>
    %30 = arith.mulf %28, %29 : vector<4x8x8xf32>
    %c0_14 = arith.constant 0 : index
    %c2 = arith.constant 2 : index
    %c0_15 = arith.constant 0 : index
    %c0_16 = arith.constant 0 : index
    %c0_17 = arith.constant 0 : index
    %31 = vector.load %arg4[%c0_14, %c2, %c0_15, %c0_16, %c0_17] : memref<1x4x4x8x8xf32, #tpu.memory_space<vmem>>, vector<1x1x4x8x8xf32>
    %32 = vector.shape_cast %31 : vector<1x1x4x8x8xf32> to vector<4x8x8xf32>
    %33 = vector.shape_cast %30 : vector<4x8x8xf32> to vector<1x1x4x8x8xf32>
    tpu.vector_store %arg4[%c0_14, %c2, %c0_15, %c0_16, %c0_17], %33 {strides = array<i32>} : memref<1x4x4x8x8xf32, #tpu.memory_space<vmem>>, vector<1x1x4x8x8xf32>,
    %34 = arith.subf %15, %13 : vector<4x8x8xf32>
    %cst_18 = arith.constant 5.000000e-01 : f32
    %35 = vector.broadcast %cst_18 : f32 to vector<4x8x8xf32>
    %36 = arith.mulf %34, %35 : vector<4x8x8xf32>
    %c0_19 = arith.constant 0 : index
    %c3 = arith.constant 3 : index
    %c0_20 = arith.constant 0 : index
    %c0_21 = arith.constant 0 : index
    %c0_22 = arith.constant 0 : index
    %37 = vector.load %arg4[%c0_19, %c3, %c0_20, %c0_21, %c0_22] : memref<1x4x4x8x8xf32, #tpu.memory_space<vmem>>, vector<1x1x4x8x8xf32>
    %38 = vector.shape_cast %37 : vector<1x1x4x8x8xf32> to vector<4x8x8xf32>
    %39 = vector.shape_cast %36 : vector<4x8x8xf32> to vector<1x1x4x8x8xf32>
    tpu.vector_store %arg4[%c0_19, %c3, %c0_20, %c0_21, %c0_22], %39 {strides = array<i32>} : memref<1x4x4x8x8xf32, #tpu.memory_space<vmem>>, vector<1x1x4x8x8xf32>,
    return
  }
  func.func @transform_0(%arg0: i32, %arg1: i32, %arg2: i32) -> (i32, i32, i32, i32) {
    %c0_i32 = arith.constant 0 : i32
    %c0_i32_0 = arith.constant 0 : i32
    return %arg0, %arg1, %arg2, %c0_i32 : i32, i32, i32, i32
  }
  func.func @transform_1(%arg0: i32, %arg1: i32, %arg2: i32) -> (i32, i32, i32, i32, i32) {
    %c0_i32 = arith.constant 0 : i32
    %c0_i32_0 = arith.constant 0 : i32
    %c0_i32_1 = arith.constant 0 : i32
    return %arg0, %c0_i32, %arg1, %arg2, %c0_i32_0 : i32, i32, i32, i32, i32
  }
}

</mosaic_0001>

<llo_original>
// kernel: tpu_custom_call.1
$region0: #{tpu_custom_call.1}
  #allocation0 [shape = 'u32[]', space=smem, size = 0x4, offset = 0x4, fixed_abs, tag = 'smem constant byte address 0x4 - core index']
  #allocation1 [shape = 'u32[72,128]{1,0:T(1,128)}', space=vmem, size = 0x9000, scoped, tag = 'internal scratch']
  %s0 = inlined_call_operand.hbm [shape: f32[2,4,8,32], index: 0, kind: input, shape index: {}]
  %s1 = inlined_call_operand.hbm [shape: f32[2,4,4,8,8], index: 1, kind: output, shape index: {}]
  %s2 = sld [smem:[#allocation0]]
  $region41: #{tpu_custom_call.1} parent=0
    _
  %s4 = ssub.s32 1, %s2
  %s5 = scalar_select 0, %s4, %s2
  $region1: #{tpu_custom_call.1} parent=0
    #allocation2 [shape = 'u8[32768]{0}', space=vmem, size = 0x8000, scoped, tag = 'input window, operand 0']
    #allocation3 [shape = 's32[2]{0}', space=sflag, size = 0x8, scoped, tag = 'scoped memory for tpu_custom_call.1']
    #allocation4 [shape = 's32[2]{0}', space=sflag, size = 0x8, scoped, tag = 'scoped memory for tpu_custom_call.1']
    #allocation5 [shape = 'u8[131072]{0}', space=vmem, size = 0x20000, scoped, tag = 'output window, operand 0']
    %6 = vsyncpa [#allocation3], 0
    %s7 = scalar_lea.sflag [#allocation3], 1
    %8 = vsyncpa %s7, 0
    %9 = vsyncpa [#allocation4], 0
    %s10 = scalar_lea.sflag [#allocation4], 1
    %11 = vsyncpa %s10, 0
    loop: start=0, step=1, limit=4
    $region2: #{tpu_custom_call.1} parent=1 // loop_pre_header
      _
    $region3: #{tpu_custom_call.1} parent=1 // loop_header
      %s13 = sphi 0, %s17
      %p14 = scmp.ge.s32.totalorder %s13, 4
      %s20 = sphi 0, %s39
      %s21 = sphi 0, %s35
      %s22 = sphi 0, %s31
      %s23 = sphi 0, %s20
      %s24 = sphi 0, %s21
      %s25 = sphi 0, %s22
      %s26 = sphi 0, %s23
      %s27 = sphi 0, %s24
      %s28 = sphi 0, %s25
      %s46 = sphi 0, %s48
      %s49 = sphi 0, %s46
      %s50 = sphi 0, %s49
      %s66 = sphi 0, %s50
      %s76 = sphi 0, %s78
      %s79 = sphi 0, %s76
      %s80 = sphi 0, %s79
      %s96 = sphi 0, %s80
    $region4: #{tpu_custom_call.1} parent=1 // loop_header_branch
      %16 = sbr.rel (%p14) target = $region8
    $region5: #{tpu_custom_call.1} parent=1 // loop_body
      %s18 = ssub.s32 %s13, 1
      %s19 = ssub.s32 %s13, 2
      %s29 = sadd.s32 1, %s22
      %p30 = scmp.ge.s32.totalorder %s29, 1
      %s31 = scalar_select %p30, 0, %s29
      %s32 = sadd.s32 1, %s21
      %s33 = scalar_select %p30, %s32, %s21
      %p34 = scmp.ge.s32.totalorder %s33, 1
      %s35 = scalar_select %p34, 0, %s33
      %s36 = sadd.s32 1, %s20
      %s37 = scalar_select %p34, %s36, %s20
      %p38 = scmp.ge.s32.totalorder %s37, 2
      %s39 = scalar_select %p38, 0, %s37
      %s40 = ssub.s32 %s20, %s39
      %s41 = ssub.s32 %s21, %s35
      %s42 = sor.u32 %s40, %s41
      %s43 = ssub.s32 %s22, %s31
      %s44 = sor.u32 %s42, %s43
      %p45 = scmp.eq.s32.totalorder %s44, 0
      %s47 = sadd.s32 %s46, 1
      %s48 = scalar_select %p45, %s46, %s47
      %p51 = pneg %p45
      %p52 = scmp.eq.s32.totalorder %s13, 1
      %p53 = por %p51, %p52
      %p54 = scmp.ne.s32.totalorder %s46, %s49
      %p55 = scmp.eq.s32.totalorder %s13, 0
      %p56 = por %p54, %p55
      %p57 = scmp.ne.s32.totalorder %s46, %s49
      %p58 = scmp.eq.s32.totalorder %s18, 1
      %p59 = por %p57, %p58
      %p60 = scmp.ne.s32.totalorder %s49, %s50
      %p61 = scmp.eq.s32.totalorder %s18, 0
      %p62 = por %p60, %p61
      %p63 = scmp.ne.s32.totalorder %s49, %s50
      %p64 = scmp.eq.s32.totalorder %s19, 1
      %p65 = por %p63, %p64
      %p67 = scmp.ne.s32.totalorder %s50, %s66
      %p68 = scmp.eq.s32.totalorder %s19, 0
      %p69 = por %p67, %p68
      %s70 = ssub.s32 %s20, %s39
      %s71 = ssub.s32 %s21, %s35
      %s72 = sor.u32 %s70, %s71
      %s73 = ssub.s32 %s22, %s31
      %s74 = sor.u32 %s72, %s73
      %p75 = scmp.eq.s32.totalorder %s74, 0
      %s77 = sadd.s32 %s76, 1
      %s78 = scalar_select %p75, %s76, %s77
      %p81 = pneg %p75
      %p82 = scmp.eq.s32.totalorder %s13, 1
      %p83 = por %p81, %p82
      %p84 = scmp.ne.s32.totalorder %s76, %s79
      %p85 = scmp.eq.s32.totalorder %s13, 0
      %p86 = por %p84, %p85
      %p87 = scmp.ne.s32.totalorder %s76, %s79
      %p88 = scmp.eq.s32.totalorder %s18, 1
      %p89 = por %p87, %p88
      %p90 = scmp.ne.s32.totalorder %s79, %s80
      %p91 = scmp.eq.s32.totalorder %s18, 0
      %p92 = por %p90, %p91
      %p93 = scmp.ne.s32.totalorder %s79, %s80
      %p94 = scmp.eq.s32.totalorder %s19, 1
      %p95 = por %p93, %p94
      %p97 = scmp.ne.s32.totalorder %s80, %s96
      %p98 = scmp.eq.s32.totalorder %s19, 0
      %p99 = por %p97, %p98
      %p100 = scmp.le.s32.totalorder 1, %s13
      %p101 = scmp.lt.s32.totalorder %s13, 3
      %p102 = pnand %p100, %p101
      %p103 = pneg %p102
      // Predicated region
      $region9: #{tpu_custom_call.1} parent=5 // pred_check
        _
      $region10: #{tpu_custom_call.1} parent=5 // pred_check_branch
        %105 = sbr.rel (%p102) target = $region12
      $region11: #{tpu_custom_call.1} parent=5 // pred_region
        %s106 = ssub.s32 %s13, 1
      $region12: #{tpu_custom_call.1} parent=5 // pred_fallthru
        _
      %p107 = scmp.lt.s32.totalorder %s13, 2
      // Predicated region
      $region13: #{tpu_custom_call.1} parent=5 // pred_check
        %p108 = pneg %p107
      $region14: #{tpu_custom_call.1} parent=5 // pred_check_branch
        %110 = sbr.rel (%p108) target = $region16
      $region15: #{tpu_custom_call.1} parent=5 // pred_region
        // Predicated region
        $region17: #{tpu_custom_call.1} parent=15 // pred_check
          %p111 = pneg %p56
        $region18: #{tpu_custom_call.1} parent=15 // pred_check_branch
          %113 = sbr.rel (%p111) target = $region20
        $region19: #{tpu_custom_call.1} parent=15 // pred_region
          %s114 = sand.u32 %s46, 1
          %s115 = scalar_lea.sflag [#allocation3], %s114
          %s116 = sand.u32 %s46, 1
          %s117 = smul.addr %s116, 32
          %s118 = scalar_lea.vmem [#allocation2], %s117
          %s119 = smul.u32 4, %s21
          %121 = vsyncadd %s115, 0
          %s122 = sadd.s32 %s22, %s119
          %s123 = smul.addr %s20, 4
          %s124 = sadd.s32 %s122, %s123
          %s125 = smul.addr %s124, 8
          %s126 = scalar_lea.hbm %s0, %s125
          %s127 = sshll.u32 %s126, 4
          %s128 = int_to_ptr.hbm [resolvable:$true] %s127
          %s129 = sshll.u32 %s118, 4
          %s130 = int_to_ptr.vmem [resolvable:$true] %s129
          %135 = dma.hbm_to_vmem [thread:$0]  %s128, 512, %s130, %s115, 128, 128, 8
        $region20: #{tpu_custom_call.1} parent=15 // pred_fallthru
          _
      $region16: #{tpu_custom_call.1} parent=5 // pred_fallthru
        _
      %p136 = scmp.le.s32.totalorder 1, %s13
      %p137 = scmp.lt.s32.totalorder %s13, 3
      %p138 = pnand %p136, %p137
      %p139 = pneg %p138
      // Predicated region
      $region21: #{tpu_custom_call.1} parent=5 // pred_check
        _
      $region22: #{tpu_custom_call.1} parent=5 // pred_check_branch
        %141 = sbr.rel (%p138) target = $region24
      $region23: #{tpu_custom_call.1} parent=5 // pred_region
        %s142 = ssub.s32 %s13, 1
        %s143 = sand.u32 %s49, 1
        %s144 = scalar_lea.sflag [#allocation3], %s143
        %s145 = sand.u32 %s49, 1
        %s146 = smul.addr %s145, 32
        %s147 = scalar_lea.vmem [#allocation2], %s146
        // Predicated region
        $region25: #{tpu_custom_call.1} parent=23 // pred_check
          %p148 = pneg %p62
        $region26: #{tpu_custom_call.1} parent=23 // pred_check_branch
          %150 = sbr.rel (%p148) target = $region28
        $region27: #{tpu_custom_call.1} parent=23 // pred_region
          %152 = dma.done %s144, 512
        $region28: #{tpu_custom_call.1} parent=23 // pred_fallthru
          _
        %s153 = sand.u32 %s49, 1
        %s154 = scalar_lea.sflag [#allocation3], %s153
        %s155 = sand.u32 %s49, 1
        %s156 = smul.addr %s155, 32
        %s157 = scalar_lea.vmem [#allocation2], %s156
        %p158 = pneg %p62
        %p159 = pneg %p59
        %p160 = pneg %p92
        %p161 = pneg %p89
        %s162 = sand.u32 %s79, 1
        %s163 = scalar_lea.sflag [#allocation4], %s162
        %s164 = sand.u32 %s79, 1
        %s165 = smul.addr %s164, 128
        %s166 = scalar_lea.vmem [#allocation5], %s165
        %s167 = smul.u32 4, %s24
        %s168 = smul.u32 4, %s24
        %v169 = vld [vmem:[%s147] sm:$0xff]
        %v170 = vld [vmem:[%s147 + $0x8] sm:$0xff]
        %v171 = vld [vmem:[%s147 + $0x10] sm:$0xff]
        %v172 = vld [vmem:[%s147 + $0x18] sm:$0xff]
        %177 = vrot.lane.b32.xlu0 %v169, 112
        %v178 = vpop.permute.xlu0 %177
        %179 = vrot.lane.b32.xlu0 %v170, 112
        %v180 = vpop.permute.xlu0 %179
        %181 = vrot.lane.b32.xlu0 %v171, 112
        %v182 = vpop.permute.xlu0 %181
        %183 = vrot.lane.b32.xlu0 %v172, 112
        %v184 = vpop.permute.xlu0 %183
        %v189 = vadd.f32 %v169, %v178
        %v190 = vadd.f32 %v170, %v180
        %v191 = vadd.f32 %v171, %v182
        %v192 = vadd.f32 %v172, %v184
        %193 = vrot.lane.b32.xlu0 %v169, 16
        %v194 = vpop.permute.xlu0 %193
        %195 = vrot.lane.b32.xlu0 %v170, 16
        %v196 = vpop.permute.xlu0 %195
        %197 = vrot.lane.b32.xlu0 %v171, 16
        %v198 = vpop.permute.xlu0 %197
        %199 = vrot.lane.b32.xlu0 %v172, 16
        %v200 = vpop.permute.xlu0 %199
        %v205 = vsub.f32 %v169, %v194
        %v206 = vsub.f32 %v170, %v196
        %v207 = vsub.f32 %v171, %v198
        %v208 = vsub.f32 %v172, %v200
        %213 = vrot.lane.b32.xlu0 %v189, 126
        %v214 = vpop.permute.xlu0 %213
        %215 = vrot.lane.b32.xlu0 %v190, 126
        %v216 = vpop.permute.xlu0 %215
        %217 = vrot.lane.b32.xlu0 %v191, 126
        %v218 = vpop.permute.xlu0 %217
        %219 = vrot.lane.b32.xlu0 %v192, 126
        %v220 = vpop.permute.xlu0 %219
        %225 = vrot.lane.b32.xlu0 %v189, 124
        %v226 = vpop.permute.xlu0 %225
        %227 = vrot.lane.b32.xlu0 %v190, 124
        %v228 = vpop.permute.xlu0 %227
        %229 = vrot.lane.b32.xlu0 %v191, 124
        %v230 = vpop.permute.xlu0 %229
        %231 = vrot.lane.b32.xlu0 %v192, 124
        %v232 = vpop.permute.xlu0 %231
        %237 = vrot.lane.b32.xlu0 %v189, 122
        %v238 = vpop.permute.xlu0 %237
        %239 = vrot.lane.b32.xlu0 %v190, 122
        %v240 = vpop.permute.xlu0 %239
        %241 = vrot.lane.b32.xlu0 %v191, 122
        %v242 = vpop.permute.xlu0 %241
        %243 = vrot.lane.b32.xlu0 %v192, 122
        %v244 = vpop.permute.xlu0 %243
        %249 = vrot.lane.b32.xlu0 %v189, 120
        %v250 = vpop.permute.xlu0 %249
        %251 = vrot.lane.b32.xlu0 %v190, 120
        %v252 = vpop.permute.xlu0 %251
        %253 = vrot.lane.b32.xlu0 %v191, 120
        %v254 = vpop.permute.xlu0 %253
        %255 = vrot.lane.b32.xlu0 %v192, 120
        %v256 = vpop.permute.xlu0 %255
        %261 = vrot.lane.b32.xlu0 %v189, 118
        %v262 = vpop.permute.xlu0 %261
        %263 = vrot.lane.b32.xlu0 %v190, 118
        %v264 = vpop.permute.xlu0 %263
        %265 = vrot.lane.b32.xlu0 %v191, 118
        %v266 = vpop.permute.xlu0 %265
        %267 = vrot.lane.b32.xlu0 %v192, 118
        %v268 = vpop.permute.xlu0 %267
        %273 = vrot.lane.b32.xlu0 %v189, 116
        %v274 = vpop.permute.xlu0 %273
        %275 = vrot.lane.b32.xlu0 %v190, 116
        %v276 = vpop.permute.xlu0 %275
        %277 = vrot.lane.b32.xlu0 %v191, 116
        %v278 = vpop.permute.xlu0 %277
        %279 = vrot.lane.b32.xlu0 %v192, 116
        %v280 = vpop.permute.xlu0 %279
        %285 = vrot.lane.b32.xlu0 %v189, 114
        %v286 = vpop.permute.xlu0 %285
        %287 = vrot.lane.b32.xlu0 %v190, 114
        %v288 = vpop.permute.xlu0 %287
        %289 = vrot.lane.b32.xlu0 %v191, 114
        %v290 = vpop.permute.xlu0 %289
        %291 = vrot.lane.b32.xlu0 %v192, 114
        %v292 = vpop.permute.xlu0 %291
        %v297 = vrot.slane %v226, 4
        %vm298 = vcmask 1047556
        %v299 = vsel %vm298, %v297, %v189
        %v300 = vrot.slane %v189, 4
        %v301 = vsel %vm298, %v226, %v300
        %v303 = vunpack.c.l.s4 1983009808
        %v304 = vunpack.c.0.s8 %v303
        %v305 = vperm.slane %v299, %v304
        %v307 = vunpack.c.l.s4 1983009808
        %v308 = vunpack.c.0.s8 %v307
        %v309 = vperm.slane %v301, %v308
        %v310 = vrot.slane %v238, 4
        %v311 = vsel %vm298, %v310, %v214
        %v312 = vrot.slane %v214, 4
        %v313 = vsel %vm298, %v238, %v312
        %v315 = vunpack.c.l.s4 1983009808
        %v316 = vunpack.c.0.s8 %v315
        %v317 = vperm.slane %v311, %v316
        %v319 = vunpack.c.l.s4 1983009808
        %v320 = vunpack.c.0.s8 %v319
        %v321 = vperm.slane %v313, %v320
        %v322 = vrot.slane %v274, 4
        %v323 = vsel %vm298, %v322, %v250
        %v324 = vrot.slane %v250, 4
        %v325 = vsel %vm298, %v274, %v324
        %v327 = vunpack.c.l.s4 1983009808
        %v328 = vunpack.c.0.s8 %v327
        %v329 = vperm.slane %v323, %v328
        %v331 = vunpack.c.l.s4 1983009808
        %v332 = vunpack.c.0.s8 %v331
        %v333 = vperm.slane %v325, %v332
        %v334 = vrot.slane %v286, 4
        %v335 = vsel %vm298, %v334, %v262
        %v336 = vrot.slane %v262, 4
        %v337 = vsel %vm298, %v286, %v336
        %v339 = vunpack.c.l.s4 1983009808
        %v340 = vunpack.c.0.s8 %v339
        %v341 = vperm.slane %v335, %v340
        %v343 = vunpack.c.l.s4 1983009808
        %v344 = vunpack.c.0.s8 %v343
        %v345 = vperm.slane %v337, %v344
        %v346 = vrot.slane %v317, 4
        %v347 = vsel %vm298, %v346, %v305
        %v348 = vrot.slane %v305, 4
        %v349 = vsel %vm298, %v317, %v348
        %v351 = vunpack.c.l.s4 1934713408
        %v352 = vunpack.c.0.s8 %v351
        %v353 = vperm.slane %v347, %v352
        %v355 = vunpack.c.l.s4 1934713408
        %v356 = vunpack.c.0.s8 %v355
        %v357 = vperm.slane %v349, %v356
        %v358 = vrot.slane %v321, 4
        %v359 = vsel %vm298, %v358, %v309
        %v360 = vrot.slane %v309, 4
        %v361 = vsel %vm298, %v321, %v360
        %v363 = vunpack.c.l.s4 1934713408
        %v364 = vunpack.c.0.s8 %v363
        %v365 = vperm.slane %v359, %v364
        %v367 = vunpack.c.l.s4 1934713408
        %v368 = vunpack.c.0.s8 %v367
        %v369 = vperm.slane %v361, %v368
        %v370 = vrot.slane %v341, 4
        %v371 = vsel %vm298, %v370, %v329
        %v372 = vrot.slane %v329, 4
        %v373 = vsel %vm298, %v341, %v372
        %v375 = vunpack.c.l.s4 1934713408
        %v376 = vunpack.c.0.s8 %v375
        %v377 = vperm.slane %v371, %v376
        %v379 = vunpack.c.l.s4 1934713408
        %v380 = vunpack.c.0.s8 %v379
        %v381 = vperm.slane %v373, %v380
        %v382 = vrot.slane %v345, 4
        %v383 = vsel %vm298, %v382, %v333
        %v384 = vrot.slane %v333, 4
        %v385 = vsel %vm298, %v345, %v384
        %v387 = vunpack.c.l.s4 1934713408
        %v388 = vunpack.c.0.s8 %v387
        %v389 = vperm.slane %v383, %v388
        %v391 = vunpack.c.l.s4 1934713408
        %v392 = vunpack.c.0.s8 %v391
        %v393 = vperm.slane %v385, %v392
        %v394 = vrot.slane %v377, 4
        %v395 = vsel %vm298, %v394, %v353
        %v396 = vrot.slane %v353, 4
        %v397 = vsel %vm298, %v377, %v396
        %v398 = vrot.slane %v381, 4
        %v399 = vsel %vm298, %v398, %v357
        %v400 = vrot.slane %v357, 4
        %v401 = vsel %vm298, %v381, %v400
        %v402 = vrot.slane %v389, 4
        %v403 = vsel %vm298, %v402, %v365
        %v404 = vrot.slane %v365, 4
        %v405 = vsel %vm298, %v389, %v404
        %v406 = vrot.slane %v393, 4
        %v407 = vsel %vm298, %v406, %v369
        %v408 = vrot.slane %v369, 4
        %v409 = vsel %vm298, %v393, %v408
        %v410 = vrot.slane %v228, 4
        %v411 = vsel %vm298, %v410, %v190
        %v412 = vrot.slane %v190, 4
        %v413 = vsel %vm298, %v228, %v412
        %v415 = vunpack.c.l.s4 1983009808
        %v416 = vunpack.c.0.s8 %v415
        %v417 = vperm.slane %v411, %v416
        %v419 = vunpack.c.l.s4 1983009808
        %v420 = vunpack.c.0.s8 %v419
        %v421 = vperm.slane %v413, %v420
        %v422 = vrot.slane %v240, 4
        %v423 = vsel %vm298, %v422, %v216
        %v424 = vrot.slane %v216, 4
        %v425 = vsel %vm298, %v240, %v424
        %v427 = vunpack.c.l.s4 1983009808
        %v428 = vunpack.c.0.s8 %v427
        %v429 = vperm.slane %v423, %v428
        %v431 = vunpack.c.l.s4 1983009808
        %v432 = vunpack.c.0.s8 %v431
        %v433 = vperm.slane %v425, %v432
        %v434 = vrot.slane %v276, 4
        %v435 = vsel %vm298, %v434, %v252
        %v436 = vrot.slane %v252, 4
        %v437 = vsel %vm298, %v276, %v436
        %v439 = vunpack.c.l.s4 1983009808
        %v440 = vunpack.c.0.s8 %v439
        %v441 = vperm.slane %v435, %v440
        %v443 = vunpack.c.l.s4 1983009808
        %v444 = vunpack.c.0.s8 %v443
        %v445 = vperm.slane %v437, %v444
        %v446 = vrot.slane %v288, 4
        %v447 = vsel %vm298, %v446, %v264
        %v448 = vrot.slane %v264, 4
        %v449 = vsel %vm298, %v288, %v448
        %v451 = vunpack.c.l.s4 1983009808
        %v452 = vunpack.c.0.s8 %v451
        %v453 = vperm.slane %v447, %v452
        %v455 = vunpack.c.l.s4 1983009808
        %v456 = vunpack.c.0.s8 %v455
        %v457 = vperm.slane %v449, %v456
        %v458 = vrot.slane %v429, 4
        %v459 = vsel %vm298, %v458, %v417
        %v460 = vrot.slane %v417, 4
        %v461 = vsel %vm298, %v429, %v460
        %v463 = vunpack.c.l.s4 1934713408
        %v464 = vunpack.c.0.s8 %v463
        %v465 = vperm.slane %v459, %v464
        %v467 = vunpack.c.l.s4 1934713408
        %v468 = vunpack.c.0.s8 %v467
        %v469 = vperm.slane %v461, %v468
        %v470 = vrot.slane %v433, 4
        %v471 = vsel %vm298, %v470, %v421
        %v472 = vrot.slane %v421, 4
        %v473 = vsel %vm298, %v433, %v472
        %v475 = vunpack.c.l.s4 1934713408
        %v476 = vunpack.c.0.s8 %v475
        %v477 = vperm.slane %v471, %v476
        %v479 = vunpack.c.l.s4 1934713408
        %v480 = vunpack.c.0.s8 %v479
        %v481 = vperm.slane %v473, %v480
        %v482 = vrot.slane %v453, 4
        %v483 = vsel %vm298, %v482, %v441
        %v484 = vrot.slane %v441, 4
        %v485 = vsel %vm298, %v453, %v484
        %v487 = vunpack.c.l.s4 1934713408
        %v488 = vunpack.c.0.s8 %v487
        %v489 = vperm.slane %v483, %v488
        %v491 = vunpack.c.l.s4 1934713408
        %v492 = vunpack.c.0.s8 %v491
        %v493 = vperm.slane %v485, %v492
        %v494 = vrot.slane %v457, 4
        %v495 = vsel %vm298, %v494, %v445
        %v496 = vrot.slane %v445, 4
        %v497 = vsel %vm298, %v457, %v496
        %v499 = vunpack.c.l.s4 1934713408
        %v500 = vunpack.c.0.s8 %v499
        %v501 = vperm.slane %v495, %v500
        %v503 = vunpack.c.l.s4 1934713408
        %v504 = vunpack.c.0.s8 %v503
        %v505 = vperm.slane %v497, %v504
        %v506 = vrot.slane %v489, 4
        %v507 = vsel %vm298, %v506, %v465
        %v508 = vrot.slane %v465, 4
        %v509 = vsel %vm298, %v489, %v508
        %v510 = vrot.slane %v493, 4
        %v511 = vsel %vm298, %v510, %v469
        %v512 = vrot.slane %v469, 4
        %v513 = vsel %vm298, %v493, %v512
        %v514 = vrot.slane %v501, 4
        %v515 = vsel %vm298, %v514, %v477
        %v516 = vrot.slane %v477, 4
        %v517 = vsel %vm298, %v501, %v516
        %v518 = vrot.slane %v505, 4
        %v519 = vsel %vm298, %v518, %v481
        %v520 = vrot.slane %v481, 4
        %v521 = vsel %vm298, %v505, %v520
        %v522 = vrot.slane %v230, 4
        %v523 = vsel %vm298, %v522, %v191
        %v524 = vrot.slane %v191, 4
        %v525 = vsel %vm298, %v230, %v524
        %v527 = vunpack.c.l.s4 1983009808
        %v528 = vunpack.c.0.s8 %v527
        %v529 = vperm.slane %v523, %v528
        %v531 = vunpack.c.l.s4 1983009808
        %v532 = vunpack.c.0.s8 %v531
        %v533 = vperm.slane %v525, %v532
        %v534 = vrot.slane %v242, 4
        %v535 = vsel %vm298, %v534, %v218
        %v536 = vrot.slane %v218, 4
        %v537 = vsel %vm298, %v242, %v536
        %v539 = vunpack.c.l.s4 1983009808
        %v540 = vunpack.c.0.s8 %v539
        %v541 = vperm.slane %v535, %v540
        %v543 = vunpack.c.l.s4 1983009808
        %v544 = vunpack.c.0.s8 %v543
        %v545 = vperm.slane %v537, %v544
        %v546 = vrot.slane %v278, 4
        %v547 = vsel %vm298, %v546, %v254
        %v548 = vrot.slane %v254, 4
        %v549 = vsel %vm298, %v278, %v548
        %v551 = vunpack.c.l.s4 1983009808
        %v552 = vunpack.c.0.s8 %v551
        %v553 = vperm.slane %v547, %v552
        %v555 = vunpack.c.l.s4 1983009808
        %v556 = vunpack.c.0.s8 %v555
        %v557 = vperm.slane %v549, %v556
        %v558 = vrot.slane %v290, 4
        %v559 = vsel %vm298, %v558, %v266
        %v560 = vrot.slane %v266, 4
        %v561 = vsel %vm298, %v290, %v560
        %v563 = vunpack.c.l.s4 1983009808
        %v564 = vunpack.c.0.s8 %v563
        %v565 = vperm.slane %v559, %v564
        %v567 = vunpack.c.l.s4 1983009808
        %v568 = vunpack.c.0.s8 %v567
        %v569 = vperm.slane %v561, %v568
        %v570 = vrot.slane %v541, 4
        %v571 = vsel %vm298, %v570, %v529
        %v572 = vrot.slane %v529, 4
        %v573 = vsel %vm298, %v541, %v572
        %v575 = vunpack.c.l.s4 1934713408
        %v576 = vunpack.c.0.s8 %v575
        %v577 = vperm.slane %v571, %v576
        %v579 = vunpack.c.l.s4 1934713408
        %v580 = vunpack.c.0.s8 %v579
        %v581 = vperm.slane %v573, %v580
        %v582 = vrot.slane %v545, 4
        %v583 = vsel %vm298, %v582, %v533
        %v584 = vrot.slane %v533, 4
        %v585 = vsel %vm298, %v545, %v584
        %v587 = vunpack.c.l.s4 1934713408
        %v588 = vunpack.c.0.s8 %v587
        %v589 = vperm.slane %v583, %v588
        %v591 = vunpack.c.l.s4 1934713408
        %v592 = vunpack.c.0.s8 %v591
        %v593 = vperm.slane %v585, %v592
        %v594 = vrot.slane %v565, 4
        %v595 = vsel %vm298, %v594, %v553
        %v596 = vrot.slane %v553, 4
        %v597 = vsel %vm298, %v565, %v596
        %v599 = vunpack.c.l.s4 1934713408
        %v600 = vunpack.c.0.s8 %v599
        %v601 = vperm.slane %v595, %v600
        %v603 = vunpack.c.l.s4 1934713408
        %v604 = vunpack.c.0.s8 %v603
        %v605 = vperm.slane %v597, %v604
        %v606 = vrot.slane %v569, 4
        %v607 = vsel %vm298, %v606, %v557
        %v608 = vrot.slane %v557, 4
        %v609 = vsel %vm298, %v569, %v608
        %v611 = vunpack.c.l.s4 1934713408
        %v612 = vunpack.c.0.s8 %v611
        %v613 = vperm.slane %v607, %v612
        %v615 = vunpack.c.l.s4 1934713408
        %v616 = vunpack.c.0.s8 %v615
        %v617 = vperm.slane %v609, %v616
        %v618 = vrot.slane %v601, 4
        %v619 = vsel %vm298, %v618, %v577
        %v620 = vrot.slane %v577, 4
        %v621 = vsel %vm298, %v601, %v620
        %v622 = vrot.slane %v605, 4
        %v623 = vsel %vm298, %v622, %v581
        %v624 = vrot.slane %v581, 4
        %v625 = vsel %vm298, %v605, %v624
        %v626 = vrot.slane %v613, 4
        %v627 = vsel %vm298, %v626, %v589
        %v628 = vrot.slane %v589, 4
        %v629 = vsel %vm298, %v613, %v628
        %v630 = vrot.slane %v617, 4
        %v631 = vsel %vm298, %v630, %v593
        %v632 = vrot.slane %v593, 4
        %v633 = vsel %vm298, %v617, %v632
        %v634 = vrot.slane %v232, 4
        %v635 = vsel %vm298, %v634, %v192
        %v636 = vrot.slane %v192, 4
        %v637 = vsel %vm298, %v232, %v636
        %v639 = vunpack.c.l.s4 1983009808
        %v640 = vunpack.c.0.s8 %v639
        %v641 = vperm.slane %v635, %v640
        %v643 = vunpack.c.l.s4 1983009808
        %v644 = vunpack.c.0.s8 %v643
        %v645 = vperm.slane %v637, %v644
        %v646 = vrot.slane %v244, 4
        %v647 = vsel %vm298, %v646, %v220
        %v648 = vrot.slane %v220, 4
        %v649 = vsel %vm298, %v244, %v648
        %v651 = vunpack.c.l.s4 1983009808
        %v652 = vunpack.c.0.s8 %v651
        %v653 = vperm.slane %v647, %v652
        %v655 = vunpack.c.l.s4 1983009808
        %v656 = vunpack.c.0.s8 %v655
        %v657 = vperm.slane %v649, %v656
        %v658 = vrot.slane %v280, 4
        %v659 = vsel %vm298, %v658, %v256
        %v660 = vrot.slane %v256, 4
        %v661 = vsel %vm298, %v280, %v660
        %v663 = vunpack.c.l.s4 1983009808
        %v664 = vunpack.c.0.s8 %v663
        %v665 = vperm.slane %v659, %v664
        %v667 = vunpack.c.l.s4 1983009808
        %v668 = vunpack.c.0.s8 %v667
        %v669 = vperm.slane %v661, %v668
        %v670 = vrot.slane %v292, 4
        %v671 = vsel %vm298, %v670, %v268
        %v672 = vrot.slane %v268, 4
        %v673 = vsel %vm298, %v292, %v672
        %v675 = vunpack.c.l.s4 1983009808
        %v676 = vunpack.c.0.s8 %v675
        %v677 = vperm.slane %v671, %v676
        %v679 = vunpack.c.l.s4 1983009808
        %v680 = vunpack.c.0.s8 %v679
        %v681 = vperm.slane %v673, %v680
        %v682 = vrot.slane %v653, 4
        %v683 = vsel %vm298, %v682, %v641
        %v684 = vrot.slane %v641, 4
        %v685 = vsel %vm298, %v653, %v684
        %v687 = vunpack.c.l.s4 1934713408
        %v688 = vunpack.c.0.s8 %v687
        %v689 = vperm.slane %v683, %v688
        %v691 = vunpack.c.l.s4 1934713408
        %v692 = vunpack.c.0.s8 %v691
        %v693 = vperm.slane %v685, %v692
        %v694 = vrot.slane %v657, 4
        %v695 = vsel %vm298, %v694, %v645
        %v696 = vrot.slane %v645, 4
        %v697 = vsel %vm298, %v657, %v696
        %v699 = vunpack.c.l.s4 1934713408
        %v700 = vunpack.c.0.s8 %v699
        %v701 = vperm.slane %v695, %v700
        %v703 = vunpack.c.l.s4 1934713408
        %v704 = vunpack.c.0.s8 %v703
        %v705 = vperm.slane %v697, %v704
        %v706 = vrot.slane %v677, 4
        %v707 = vsel %vm298, %v706, %v665
        %v708 = vrot.slane %v665, 4
        %v709 = vsel %vm298, %v677, %v708
        %v711 = vunpack.c.l.s4 1934713408
        %v712 = vunpack.c.0.s8 %v711
        %v713 = vperm.slane %v707, %v712
        %v715 = vunpack.c.l.s4 1934713408
        %v716 = vunpack.c.0.s8 %v715
        %v717 = vperm.slane %v709, %v716
        %v718 = vrot.slane %v681, 4
        %v719 = vsel %vm298, %v718, %v669
        %v720 = vrot.slane %v669, 4
        %v721 = vsel %vm298, %v681, %v720
        %v723 = vunpack.c.l.s4 1934713408
        %v724 = vunpack.c.0.s8 %v723
        %v725 = vperm.slane %v719, %v724
        %v727 = vunpack.c.l.s4 1934713408
        %v728 = vunpack.c.0.s8 %v727
        %v729 = vperm.slane %v721, %v728
        %v730 = vrot.slane %v713, 4
        %v731 = vsel %vm298, %v730, %v689
        %v732 = vrot.slane %v689, 4
        %v733 = vsel %vm298, %v713, %v732
        %v734 = vrot.slane %v717, 4
        %v735 = vsel %vm298, %v734, %v693
        %v736 = vrot.slane %v693, 4
        %v737 = vsel %vm298, %v717, %v736
        %v738 = vrot.slane %v725, 4
        %v739 = vsel %vm298, %v738, %v701
        %v740 = vrot.slane %v701, 4
        %v741 = vsel %vm298, %v725, %v740
        %v742 = vrot.slane %v729, 4
        %v743 = vsel %vm298, %v742, %v705
        %v744 = vrot.slane %v705, 4
        %v745 = vsel %vm298, %v729, %v744
        %750 = vrot.lane.b32.xlu0 %v205, 126
        %v751 = vpop.permute.xlu0 %750
        %752 = vrot.lane.b32.xlu0 %v206, 126
        %v753 = vpop.permute.xlu0 %752
        %754 = vrot.lane.b32.xlu0 %v207, 126
        %v755 = vpop.permute.xlu0 %754
        %756 = vrot.lane.b32.xlu0 %v208, 126
        %v757 = vpop.permute.xlu0 %756
        %758 = vrot.lane.b32.xlu0 %v205, 124
        %v759 = vpop.permute.xlu0 %758
        %760 = vrot.lane.b32.xlu0 %v206, 124
        %v761 = vpop.permute.xlu0 %760
        %762 = vrot.lane.b32.xlu0 %v207, 124
        %v763 = vpop.permute.xlu0 %762
        %764 = vrot.lane.b32.xlu0 %v208, 124
        %v765 = vpop.permute.xlu0 %764
        %766 = vrot.lane.b32.xlu0 %v205, 122
        %v767 = vpop.permute.xlu0 %766
        %768 = vrot.lane.b32.xlu0 %v206, 122
        %v769 = vpop.permute.xlu0 %768
        %770 = vrot.lane.b32.xlu0 %v207, 122
        %v771 = vpop.permute.xlu0 %770
        %772 = vrot.lane.b32.xlu0 %v208, 122
        %v773 = vpop.permute.xlu0 %772
        %774 = vrot.lane.b32.xlu0 %v205, 120
        %v775 = vpop.permute.xlu0 %774
        %776 = vrot.lane.b32.xlu0 %v206, 120
        %v777 = vpop.permute.xlu0 %776
        %778 = vrot.lane.b32.xlu0 %v207, 120
        %v779 = vpop.permute.xlu0 %778
        %780 = vrot.lane.b32.xlu0 %v208, 120
        %v781 = vpop.permute.xlu0 %780
        %782 = vrot.lane.b32.xlu0 %v205, 118
        %v783 = vpop.permute.xlu0 %782
        %784 = vrot.lane.b32.xlu0 %v206, 118
        %v785 = vpop.permute.xlu0 %784
        %786 = vrot.lane.b32.xlu0 %v207, 118
        %v787 = vpop.permute.xlu0 %786
        %788 = vrot.lane.b32.xlu0 %v208, 118
        %v789 = vpop.permute.xlu0 %788
        %790 = vrot.lane.b32.xlu0 %v205, 116
        %v791 = vpop.permute.xlu0 %790
        %792 = vrot.lane.b32.xlu0 %v206, 116
        %v793 = vpop.permute.xlu0 %792
        %794 = vrot.lane.b32.xlu0 %v207, 116
        %v795 = vpop.permute.xlu0 %794
        %796 = vrot.lane.b32.xlu0 %v208, 116
        %v797 = vpop.permute.xlu0 %796
        %798 = vrot.lane.b32.xlu0 %v205, 114
        %v799 = vpop.permute.xlu0 %798
        %800 = vrot.lane.b32.xlu0 %v206, 114
        %v801 = vpop.permute.xlu0 %800
        %802 = vrot.lane.b32.xlu0 %v207, 114
        %v803 = vpop.permute.xlu0 %802
        %804 = vrot.lane.b32.xlu0 %v208, 114
        %v805 = vpop.permute.xlu0 %804
        %806 = vrot.lane.b32.xlu0 %v205, 112
        %v807 = vpop.permute.xlu0 %806
        %808 = vrot.lane.b32.xlu0 %v751, 112
        %v809 = vpop.permute.xlu0 %808
        %810 = vrot.lane.b32.xlu0 %v759, 112
        %v811 = vpop.permute.xlu0 %810
        %812 = vrot.lane.b32.xlu0 %v767, 112
        %v813 = vpop.permute.xlu0 %812
        %814 = vrot.lane.b32.xlu0 %v775, 112
        %v815 = vpop.permute.xlu0 %814
        %816 = vrot.lane.b32.xlu0 %v783, 112
        %v817 = vpop.permute.xlu0 %816
        %818 = vrot.lane.b32.xlu0 %v791, 112
        %v819 = vpop.permute.xlu0 %818
        %820 = vrot.lane.b32.xlu0 %v799, 112
        %v821 = vpop.permute.xlu0 %820
        %822 = vrot.lane.b32.xlu0 %v206, 112
        %v823 = vpop.permute.xlu0 %822
        %824 = vrot.lane.b32.xlu0 %v753, 112
        %v825 = vpop.permute.xlu0 %824
        %826 = vrot.lane.b32.xlu0 %v761, 112
        %v827 = vpop.permute.xlu0 %826
        %828 = vrot.lane.b32.xlu0 %v769, 112
        %v829 = vpop.permute.xlu0 %828
        %830 = vrot.lane.b32.xlu0 %v777, 112
        %v831 = vpop.permute.xlu0 %830
        %832 = vrot.lane.b32.xlu0 %v785, 112
        %v833 = vpop.permute.xlu0 %832
        %834 = vrot.lane.b32.xlu0 %v793, 112
        %v835 = vpop.permute.xlu0 %834
        %836 = vrot.lane.b32.xlu0 %v801, 112
        %v837 = vpop.permute.xlu0 %836
        %838 = vrot.lane.b32.xlu0 %v207, 112
        %v839 = vpop.permute.xlu0 %838
        %840 = vrot.lane.b32.xlu0 %v755, 112
        %v841 = vpop.permute.xlu0 %840
        %842 = vrot.lane.b32.xlu0 %v763, 112
        %v843 = vpop.permute.xlu0 %842
        %844 = vrot.lane.b32.xlu0 %v771, 112
        %v845 = vpop.permute.xlu0 %844
        %846 = vrot.lane.b32.xlu0 %v779, 112
        %v847 = vpop.permute.xlu0 %846
        %848 = vrot.lane.b32.xlu0 %v787, 112
        %v849 = vpop.permute.xlu0 %848
        %850 = vrot.lane.b32.xlu0 %v795, 112
        %v851 = vpop.permute.xlu0 %850
        %852 = vrot.lane.b32.xlu0 %v803, 112
        %v853 = vpop.permute.xlu0 %852
        %854 = vrot.lane.b32.xlu0 %v208, 112
        %v855 = vpop.permute.xlu0 %854
        %856 = vrot.lane.b32.xlu0 %v757, 112
        %v857 = vpop.permute.xlu0 %856
        %858 = vrot.lane.b32.xlu0 %v765, 112
        %v859 = vpop.permute.xlu0 %858
        %860 = vrot.lane.b32.xlu0 %v773, 112
        %v861 = vpop.permute.xlu0 %860
        %862 = vrot.lane.b32.xlu0 %v781, 112
        %v863 = vpop.permute.xlu0 %862
        %864 = vrot.lane.b32.xlu0 %v789, 112
        %v865 = vpop.permute.xlu0 %864
        %866 = vrot.lane.b32.xlu0 %v797, 112
        %v867 = vpop.permute.xlu0 %866
        %868 = vrot.lane.b32.xlu0 %v805, 112
        %v869 = vpop.permute.xlu0 %868
        %v902 = vrot.slane %v811, 4
        %v903 = vsel %vm298, %v902, %v807
        %v904 = vrot.slane %v807, 4
        %v905 = vsel %vm298, %v811, %v904
        %v907 = vunpack.c.l.s4 1983009808
        %v908 = vunpack.c.0.s8 %v907
        %v909 = vperm.slane %v903, %v908
        %v911 = vunpack.c.l.s4 1983009808
        %v912 = vunpack.c.0.s8 %v911
        %v913 = vperm.slane %v905, %v912
        %v914 = vrot.slane %v813, 4
        %v915 = vsel %vm298, %v914, %v809
        %v916 = vrot.slane %v809, 4
        %v917 = vsel %vm298, %v813, %v916
        %v919 = vunpack.c.l.s4 1983009808
        %v920 = vunpack.c.0.s8 %v919
        %v921 = vperm.slane %v915, %v920
        %v923 = vunpack.c.l.s4 1983009808
        %v924 = vunpack.c.0.s8 %v923
        %v925 = vperm.slane %v917, %v924
        %v926 = vrot.slane %v819, 4
        %v927 = vsel %vm298, %v926, %v815
        %v928 = vrot.slane %v815, 4
        %v929 = vsel %vm298, %v819, %v928
        %v931 = vunpack.c.l.s4 1983009808
        %v932 = vunpack.c.0.s8 %v931
        %v933 = vperm.slane %v927, %v932
        %v935 = vunpack.c.l.s4 1983009808
        %v936 = vunpack.c.0.s8 %v935
        %v937 = vperm.slane %v929, %v936
        %v938 = vrot.slane %v821, 4
        %v939 = vsel %vm298, %v938, %v817
        %v940 = vrot.slane %v817, 4
        %v941 = vsel %vm298, %v821, %v940
        %v943 = vunpack.c.l.s4 1983009808
        %v944 = vunpack.c.0.s8 %v943
        %v945 = vperm.slane %v939, %v944
        %v947 = vunpack.c.l.s4 1983009808
        %v948 = vunpack.c.0.s8 %v947
        %v949 = vperm.slane %v941, %v948
        %v950 = vrot.slane %v921, 4
        %v951 = vsel %vm298, %v950, %v909
        %v952 = vrot.slane %v909, 4
        %v953 = vsel %vm298, %v921, %v952
        %v955 = vunpack.c.l.s4 1934713408
        %v956 = vunpack.c.0.s8 %v955
        %v957 = vperm.slane %v951, %v956
        %v959 = vunpack.c.l.s4 1934713408
        %v960 = vunpack.c.0.s8 %v959
        %v961 = vperm.slane %v953, %v960
        %v962 = vrot.slane %v925, 4
        %v963 = vsel %vm298, %v962, %v913
        %v964 = vrot.slane %v913, 4
        %v965 = vsel %vm298, %v925, %v964
        %v967 = vunpack.c.l.s4 1934713408
        %v968 = vunpack.c.0.s8 %v967
        %v969 = vperm.slane %v963, %v968
        %v971 = vunpack.c.l.s4 1934713408
        %v972 = vunpack.c.0.s8 %v971
        %v973 = vperm.slane %v965, %v972
        %v974 = vrot.slane %v945, 4
        %v975 = vsel %vm298, %v974, %v933
        %v976 = vrot.slane %v933, 4
        %v977 = vsel %vm298, %v945, %v976
        %v979 = vunpack.c.l.s4 1934713408
        %v980 = vunpack.c.0.s8 %v979
        %v981 = vperm.slane %v975, %v980
        %v983 = vunpack.c.l.s4 1934713408
        %v984 = vunpack.c.0.s8 %v983
        %v985 = vperm.slane %v977, %v984
        %v986 = vrot.slane %v949, 4
        %v987 = vsel %vm298, %v986, %v937
        %v988 = vrot.slane %v937, 4
        %v989 = vsel %vm298, %v949, %v988
        %v991 = vunpack.c.l.s4 1934713408
        %v992 = vunpack.c.0.s8 %v991
        %v993 = vperm.slane %v987, %v992
        %v995 = vunpack.c.l.s4 1934713408
        %v996 = vunpack.c.0.s8 %v995
        %v997 = vperm.slane %v989, %v996
        %v998 = vrot.slane %v981, 4
        %v999 = vsel %vm298, %v998, %v957
        %v1000 = vrot.slane %v957, 4
        %v1001 = vsel %vm298, %v981, %v1000
        %v1002 = vrot.slane %v985, 4
        %v1003 = vsel %vm298, %v1002, %v961
        %v1004 = vrot.slane %v961, 4
        %v1005 = vsel %vm298, %v985, %v1004
        %v1006 = vrot.slane %v993, 4
        %v1007 = vsel %vm298, %v1006, %v969
        %v1008 = vrot.slane %v969, 4
        %v1009 = vsel %vm298, %v993, %v1008
        %v1010 = vrot.slane %v997, 4
        %v1011 = vsel %vm298, %v1010, %v973
        %v1012 = vrot.slane %v973, 4
        %v1013 = vsel %vm298, %v997, %v1012
        %v1014 = vrot.slane %v827, 4
        %v1015 = vsel %vm298, %v1014, %v823
        %v1016 = vrot.slane %v823, 4
        %v1017 = vsel %vm298, %v827, %v1016
        %v1019 = vunpack.c.l.s4 1983009808
        %v1020 = vunpack.c.0.s8 %v1019
        %v1021 = vperm.slane %v1015, %v1020
        %v1023 = vunpack.c.l.s4 1983009808
        %v1024 = vunpack.c.0.s8 %v1023
        %v1025 = vperm.slane %v1017, %v1024
        %v1026 = vrot.slane %v829, 4
        %v1027 = vsel %vm298, %v1026, %v825
        %v1028 = vrot.slane %v825, 4
        %v1029 = vsel %vm298, %v829, %v1028
        %v1031 = vunpack.c.l.s4 1983009808
        %v1032 = vunpack.c.0.s8 %v1031
        %v1033 = vperm.slane %v1027, %v1032
        %v1035 = vunpack.c.l.s4 1983009808
        %v1036 = vunpack.c.0.s8 %v1035
        %v1037 = vperm.slane %v1029, %v1036
        %v1038 = vrot.slane %v835, 4
        %v1039 = vsel %vm298, %v1038, %v831
        %v1040 = vrot.slane %v831, 4
        %v1041 = vsel %vm298, %v835, %v1040
        %v1043 = vunpack.c.l.s4 1983009808
        %v1044 = vunpack.c.0.s8 %v1043
        %v1045 = vperm.slane %v1039, %v1044
        %v1047 = vunpack.c.l.s4 1983009808
        %v1048 = vunpack.c.0.s8 %v1047
        %v1049 = vperm.slane %v1041, %v1048
        %v1050 = vrot.slane %v837, 4
        %v1051 = vsel %vm298, %v1050, %v833
        %v1052 = vrot.slane %v833, 4
        %v1053 = vsel %vm298, %v837, %v1052
        %v1055 = vunpack.c.l.s4 1983009808
        %v1056 = vunpack.c.0.s8 %v1055
        %v1057 = vperm.slane %v1051, %v1056
        %v1059 = vunpack.c.l.s4 1983009808
        %v1060 = vunpack.c.0.s8 %v1059
        %v1061 = vperm.slane %v1053, %v1060
        %v1062 = vrot.slane %v1033, 4
        %v1063 = vsel %vm298, %v1062, %v1021
        %v1064 = vrot.slane %v1021, 4
        %v1065 = vsel %vm298, %v1033, %v1064
        %v1067 = vunpack.c.l.s4 1934713408
        %v1068 = vunpack.c.0.s8 %v1067
        %v1069 = vperm.slane %v1063, %v1068
        %v1071 = vunpack.c.l.s4 1934713408
        %v1072 = vunpack.c.0.s8 %v1071
        %v1073 = vperm.slane %v1065, %v1072
        %v1074 = vrot.slane %v1037, 4
        %v1075 = vsel %vm298, %v1074, %v1025
        %v1076 = vrot.slane %v1025, 4
        %v1077 = vsel %vm298, %v1037, %v1076
        %v1079 = vunpack.c.l.s4 1934713408
        %v1080 = vunpack.c.0.s8 %v1079
        %v1081 = vperm.slane %v1075, %v1080
        %v1083 = vunpack.c.l.s4 1934713408
        %v1084 = vunpack.c.0.s8 %v1083
        %v1085 = vperm.slane %v1077, %v1084
        %v1086 = vrot.slane %v1057, 4
        %v1087 = vsel %vm298, %v1086, %v1045
        %v1088 = vrot.slane %v1045, 4
        %v1089 = vsel %vm298, %v1057, %v1088
        %v1091 = vunpack.c.l.s4 1934713408
        %v1092 = vunpack.c.0.s8 %v1091
        %v1093 = vperm.slane %v1087, %v1092
        %v1095 = vunpack.c.l.s4 1934713408
        %v1096 = vunpack.c.0.s8 %v1095
        %v1097 = vperm.slane %v1089, %v1096
        %v1098 = vrot.slane %v1061, 4
        %v1099 = vsel %vm298, %v1098, %v1049
        %v1100 = vrot.slane %v1049, 4
        %v1101 = vsel %vm298, %v1061, %v1100
        %v1103 = vunpack.c.l.s4 1934713408
        %v1104 = vunpack.c.0.s8 %v1103
        %v1105 = vperm.slane %v1099, %v1104
        %v1107 = vunpack.c.l.s4 1934713408
        %v1108 = vunpack.c.0.s8 %v1107
        %v1109 = vperm.slane %v1101, %v1108
        %v1110 = vrot.slane %v1093, 4
        %v1111 = vsel %vm298, %v1110, %v1069
        %v1112 = vrot.slane %v1069, 4
        %v1113 = vsel %vm298, %v1093, %v1112
        %v1114 = vrot.slane %v1097, 4
        %v1115 = vsel %vm298, %v1114, %v1073
        %v1116 = vrot.slane %v1073, 4
        %v1117 = vsel %vm298, %v1097, %v1116
        %v1118 = vrot.slane %v1105, 4
        %v1119 = vsel %vm298, %v1118, %v1081
        %v1120 = vrot.slane %v1081, 4
        %v1121 = vsel %vm298, %v1105, %v1120
        %v1122 = vrot.slane %v1109, 4
        %v1123 = vsel %vm298, %v1122, %v1085
        %v1124 = vrot.slane %v1085, 4
        %v1125 = vsel %vm298, %v1109, %v1124
        %v1126 = vrot.slane %v843, 4
        %v1127 = vsel %vm298, %v1126, %v839
        %v1128 = vrot.slane %v839, 4
        %v1129 = vsel %vm298, %v843, %v1128
        %v1131 = vunpack.c.l.s4 1983009808
        %v1132 = vunpack.c.0.s8 %v1131
        %v1133 = vperm.slane %v1127, %v1132
        %v1135 = vunpack.c.l.s4 1983009808
        %v1136 = vunpack.c.0.s8 %v1135
        %v1137 = vperm.slane %v1129, %v1136
        %v1138 = vrot.slane %v845, 4
        %v1139 = vsel %vm298, %v1138, %v841
        %v1140 = vrot.slane %v841, 4
        %v1141 = vsel %vm298, %v845, %v1140
        %v1143 = vunpack.c.l.s4 1983009808
        %v1144 = vunpack.c.0.s8 %v1143
        %v1145 = vperm.slane %v1139, %v1144
        %v1147 = vunpack.c.l.s4 1983009808
        %v1148 = vunpack.c.0.s8 %v1147
        %v1149 = vperm.slane %v1141, %v1148
        %v1150 = vrot.slane %v851, 4
        %v1151 = vsel %vm298, %v1150, %v847
        %v1152 = vrot.slane %v847, 4
        %v1153 = vsel %vm298, %v851, %v1152
        %v1155 = vunpack.c.l.s4 1983009808
        %v1156 = vunpack.c.0.s8 %v1155
        %v1157 = vperm.slane %v1151, %v1156
        %v1159 = vunpack.c.l.s4 1983009808
        %v1160 = vunpack.c.0.s8 %v1159
        %v1161 = vperm.slane %v1153, %v1160
        %v1162 = vrot.slane %v853, 4
        %v1163 = vsel %vm298, %v1162, %v849
        %v1164 = vrot.slane %v849, 4
        %v1165 = vsel %vm298, %v853, %v1164
        %v1167 = vunpack.c.l.s4 1983009808
        %v1168 = vunpack.c.0.s8 %v1167
        %v1169 = vperm.slane %v1163, %v1168
        %v1171 = vunpack.c.l.s4 1983009808
        %v1172 = vunpack.c.0.s8 %v1171
        %v1173 = vperm.slane %v1165, %v1172
        %v1174 = vrot.slane %v1145, 4
        %v1175 = vsel %vm298, %v1174, %v1133
        %v1176 = vrot.slane %v1133, 4
        %v1177 = vsel %vm298, %v1145, %v1176
        %v1179 = vunpack.c.l.s4 1934713408
        %v1180 = vunpack.c.0.s8 %v1179
        %v1181 = vperm.slane %v1175, %v1180
        %v1183 = vunpack.c.l.s4 1934713408
        %v1184 = vunpack.c.0.s8 %v1183
        %v1185 = vperm.slane %v1177, %v1184
        %v1186 = vrot.slane %v1149, 4
        %v1187 = vsel %vm298, %v1186, %v1137
        %v1188 = vrot.slane %v1137, 4
        %v1189 = vsel %vm298, %v1149, %v1188
        %v1191 = vunpack.c.l.s4 1934713408
        %v1192 = vunpack.c.0.s8 %v1191
        %v1193 = vperm.slane %v1187, %v1192
        %v1195 = vunpack.c.l.s4 1934713408
        %v1196 = vunpack.c.0.s8 %v1195
        %v1197 = vperm.slane %v1189, %v1196
        %v1198 = vrot.slane %v1169, 4
        %v1199 = vsel %vm298, %v1198, %v1157
        %v1200 = vrot.slane %v1157, 4
        %v1201 = vsel %vm298, %v1169, %v1200
        %v1203 = vunpack.c.l.s4 1934713408
        %v1204 = vunpack.c.0.s8 %v1203
        %v1205 = vperm.slane %v1199, %v1204
        %v1207 = vunpack.c.l.s4 1934713408
        %v1208 = vunpack.c.0.s8 %v1207
        %v1209 = vperm.slane %v1201, %v1208
        %v1210 = vrot.slane %v1173, 4
        %v1211 = vsel %vm298, %v1210, %v1161
        %v1212 = vrot.slane %v1161, 4
        %v1213 = vsel %vm298, %v1173, %v1212
        %v1215 = vunpack.c.l.s4 1934713408
        %v1216 = vunpack.c.0.s8 %v1215
        %v1217 = vperm.slane %v1211, %v1216
        %v1219 = vunpack.c.l.s4 1934713408
        %v1220 = vunpack.c.0.s8 %v1219
        %v1221 = vperm.slane %v1213, %v1220
        %v1222 = vrot.slane %v1205, 4
        %v1223 = vsel %vm298, %v1222, %v1181
        %v1224 = vrot.slane %v1181, 4
        %v1225 = vsel %vm298, %v1205, %v1224
        %v1226 = vrot.slane %v1209, 4
        %v1227 = vsel %vm298, %v1226, %v1185
        %v1228 = vrot.slane %v1185, 4
        %v1229 = vsel %vm298, %v1209, %v1228
        %v1230 = vrot.slane %v1217, 4
        %v1231 = vsel %vm298, %v1230, %v1193
        %v1232 = vrot.slane %v1193, 4
        %v1233 = vsel %vm298, %v1217, %v1232
        %v1234 = vrot.slane %v1221, 4
        %v1235 = vsel %vm298, %v1234, %v1197
        %v1236 = vrot.slane %v1197, 4
        %v1237 = vsel %vm298, %v1221, %v1236
        %v1238 = vrot.slane %v859, 4
        %v1239 = vsel %vm298, %v1238, %v855
        %v1240 = vrot.slane %v855, 4
        %v1241 = vsel %vm298, %v859, %v1240
        %v1243 = vunpack.c.l.s4 1983009808
        %v1244 = vunpack.c.0.s8 %v1243
        %v1245 = vperm.slane %v1239, %v1244
        %v1247 = vunpack.c.l.s4 1983009808
        %v1248 = vunpack.c.0.s8 %v1247
        %v1249 = vperm.slane %v1241, %v1248
        %v1250 = vrot.slane %v861, 4
        %v1251 = vsel %vm298, %v1250, %v857
        %v1252 = vrot.slane %v857, 4
        %v1253 = vsel %vm298, %v861, %v1252
        %v1255 = vunpack.c.l.s4 1983009808
        %v1256 = vunpack.c.0.s8 %v1255
        %v1257 = vperm.slane %v1251, %v1256
        %v1259 = vunpack.c.l.s4 1983009808
        %v1260 = vunpack.c.0.s8 %v1259
        %v1261 = vperm.slane %v1253, %v1260
        %v1262 = vrot.slane %v867, 4
        %v1263 = vsel %vm298, %v1262, %v863
        %v1264 = vrot.slane %v863, 4
        %v1265 = vsel %vm298, %v867, %v1264
        %v1267 = vunpack.c.l.s4 1983009808
        %v1268 = vunpack.c.0.s8 %v1267
        %v1269 = vperm.slane %v1263, %v1268
        %v1271 = vunpack.c.l.s4 1983009808
        %v1272 = vunpack.c.0.s8 %v1271
        %v1273 = vperm.slane %v1265, %v1272
        %v1274 = vrot.slane %v869, 4
        %v1275 = vsel %vm298, %v1274, %v865
        %v1276 = vrot.slane %v865, 4
        %v1277 = vsel %vm298, %v869, %v1276
        %v1279 = vunpack.c.l.s4 1983009808
        %v1280 = vunpack.c.0.s8 %v1279
        %v1281 = vperm.slane %v1275, %v1280
        %v1283 = vunpack.c.l.s4 1983009808
        %v1284 = vunpack.c.0.s8 %v1283
        %v1285 = vperm.slane %v1277, %v1284
        %v1286 = vrot.slane %v1257, 4
        %v1287 = vsel %vm298, %v1286, %v1245
        %v1288 = vrot.slane %v1245, 4
        %v1289 = vsel %vm298, %v1257, %v1288
        %v1291 = vunpack.c.l.s4 1934713408
        %v1292 = vunpack.c.0.s8 %v1291
        %v1293 = vperm.slane %v1287, %v1292
        %v1295 = vunpack.c.l.s4 1934713408
        %v1296 = vunpack.c.0.s8 %v1295
        %v1297 = vperm.slane %v1289, %v1296
        %v1298 = vrot.slane %v1261, 4
        %v1299 = vsel %vm298, %v1298, %v1249
        %v1300 = vrot.slane %v1249, 4
        %v1301 = vsel %vm298, %v1261, %v1300
        %v1303 = vunpack.c.l.s4 1934713408
        %v1304 = vunpack.c.0.s8 %v1303
        %v1305 = vperm.slane %v1299, %v1304
        %v1307 = vunpack.c.l.s4 1934713408
        %v1308 = vunpack.c.0.s8 %v1307
        %v1309 = vperm.slane %v1301, %v1308
        %v1310 = vrot.slane %v1281, 4
        %v1311 = vsel %vm298, %v1310, %v1269
        %v1312 = vrot.slane %v1269, 4
        %v1313 = vsel %vm298, %v1281, %v1312
        %v1315 = vunpack.c.l.s4 1934713408
        %v1316 = vunpack.c.0.s8 %v1315
        %v1317 = vperm.slane %v1311, %v1316
        %v1319 = vunpack.c.l.s4 1934713408
        %v1320 = vunpack.c.0.s8 %v1319
        %v1321 = vperm.slane %v1313, %v1320
        %v1322 = vrot.slane %v1285, 4
        %v1323 = vsel %vm298, %v1322, %v1273
        %v1324 = vrot.slane %v1273, 4
        %v1325 = vsel %vm298, %v1285, %v1324
        %v1327 = vunpack.c.l.s4 1934713408
        %v1328 = vunpack.c.0.s8 %v1327
        %v1329 = vperm.slane %v1323, %v1328
        %v1331 = vunpack.c.l.s4 1934713408
        %v1332 = vunpack.c.0.s8 %v1331
        %v1333 = vperm.slane %v1325, %v1332
        %v1334 = vrot.slane %v1317, 4
        %v1335 = vsel %vm298, %v1334, %v1293
        %v1336 = vrot.slane %v1293, 4
        %v1337 = vsel %vm298, %v1317, %v1336
        %v1338 = vrot.slane %v1321, 4
        %v1339 = vsel %vm298, %v1338, %v1297
        %v1340 = vrot.slane %v1297, 4
        %v1341 = vsel %vm298, %v1321, %v1340
        %v1342 = vrot.slane %v1329, 4
        %v1343 = vsel %vm298, %v1342, %v1305
        %v1344 = vrot.slane %v1305, 4
        %v1345 = vsel %vm298, %v1329, %v1344
        %v1346 = vrot.slane %v1333, 4
        %v1347 = vsel %vm298, %v1346, %v1309
        %v1348 = vrot.slane %v1309, 4
        %v1349 = vsel %vm298, %v1333, %v1348
        %1382 = vrot.lane.b32.xlu0 %v395, 127
        %v1383 = vpop.permute.xlu0 %1382
        %1384 = vrot.lane.b32.xlu0 %v397, 127
        %v1385 = vpop.permute.xlu0 %1384
        %1386 = vrot.lane.b32.xlu0 %v399, 127
        %v1387 = vpop.permute.xlu0 %1386
        %1388 = vrot.lane.b32.xlu0 %v401, 127
        %v1389 = vpop.permute.xlu0 %1388
        %1390 = vrot.lane.b32.xlu0 %v403, 127
        %v1391 = vpop.permute.xlu0 %1390
        %1392 = vrot.lane.b32.xlu0 %v405, 127
        %v1393 = vpop.permute.xlu0 %1392
        %1394 = vrot.lane.b32.xlu0 %v407, 127
        %v1395 = vpop.permute.xlu0 %1394
        %1396 = vrot.lane.b32.xlu0 %v409, 127
        %v1397 = vpop.permute.xlu0 %1396
        %1398 = vrot.lane.b32.xlu0 %v507, 127
        %v1399 = vpop.permute.xlu0 %1398
        %1400 = vrot.lane.b32.xlu0 %v509, 127
        %v1401 = vpop.permute.xlu0 %1400
        %1402 = vrot.lane.b32.xlu0 %v511, 127
        %v1403 = vpop.permute.xlu0 %1402
        %1404 = vrot.lane.b32.xlu0 %v513, 127
        %v1405 = vpop.permute.xlu0 %1404
        %1406 = vrot.lane.b32.xlu0 %v515, 127
        %v1407 = vpop.permute.xlu0 %1406
        %1408 = vrot.lane.b32.xlu0 %v517, 127
        %v1409 = vpop.permute.xlu0 %1408
        %1410 = vrot.lane.b32.xlu0 %v519, 127
        %v1411 = vpop.permute.xlu0 %1410
        %1412 = vrot.lane.b32.xlu0 %v521, 127
        %v1413 = vpop.permute.xlu0 %1412
        %1414 = vrot.lane.b32.xlu0 %v619, 127
        %v1415 = vpop.permute.xlu0 %1414
        %1416 = vrot.lane.b32.xlu0 %v621, 127
        %v1417 = vpop.permute.xlu0 %1416
        %1418 = vrot.lane.b32.xlu0 %v623, 127
        %v1419 = vpop.permute.xlu0 %1418
        %1420 = vrot.lane.b32.xlu0 %v625, 127
        %v1421 = vpop.permute.xlu0 %1420
        %1422 = vrot.lane.b32.xlu0 %v627, 127
        %v1423 = vpop.permute.xlu0 %1422
        %1424 = vrot.lane.b32.xlu0 %v629, 127
        %v1425 = vpop.permute.xlu0 %1424
        %1426 = vrot.lane.b32.xlu0 %v631, 127
        %v1427 = vpop.permute.xlu0 %1426
        %1428 = vrot.lane.b32.xlu0 %v633, 127
        %v1429 = vpop.permute.xlu0 %1428
        %1430 = vrot.lane.b32.xlu0 %v731, 127
        %v1431 = vpop.permute.xlu0 %1430
        %1432 = vrot.lane.b32.xlu0 %v733, 127
        %v1433 = vpop.permute.xlu0 %1432
        %1434 = vrot.lane.b32.xlu0 %v735, 127
        %v1435 = vpop.permute.xlu0 %1434
        %1436 = vrot.lane.b32.xlu0 %v737, 127
        %v1437 = vpop.permute.xlu0 %1436
        %1438 = vrot.lane.b32.xlu0 %v739, 127
        %v1439 = vpop.permute.xlu0 %1438
        %1440 = vrot.lane.b32.xlu0 %v741, 127
        %v1441 = vpop.permute.xlu0 %1440
        %1442 = vrot.lane.b32.xlu0 %v743, 127
        %v1443 = vpop.permute.xlu0 %1442
        %1444 = vrot.lane.b32.xlu0 %v745, 127
        %v1445 = vpop.permute.xlu0 %1444
        %v1478 = vadd.f32 %v395, %v1383
        %v1479 = vadd.f32 %v397, %v1385
        %v1480 = vadd.f32 %v399, %v1387
        %v1481 = vadd.f32 %v401, %v1389
        %v1482 = vadd.f32 %v403, %v1391
        %v1483 = vadd.f32 %v405, %v1393
        %v1484 = vadd.f32 %v407, %v1395
        %v1485 = vadd.f32 %v409, %v1397
        %v1486 = vadd.f32 %v507, %v1399
        %v1487 = vadd.f32 %v509, %v1401
        %v1488 = vadd.f32 %v511, %v1403
        %v1489 = vadd.f32 %v513, %v1405
        %v1490 = vadd.f32 %v515, %v1407
        %v1491 = vadd.f32 %v517, %v1409
        %v1492 = vadd.f32 %v519, %v1411
        %v1493 = vadd.f32 %v521, %v1413
        %v1494 = vadd.f32 %v619, %v1415
        %v1495 = vadd.f32 %v621, %v1417
        %v1496 = vadd.f32 %v623, %v1419
        %v1497 = vadd.f32 %v625, %v1421
        %v1498 = vadd.f32 %v627, %v1423
        %v1499 = vadd.f32 %v629, %v1425
        %v1500 = vadd.f32 %v631, %v1427
        %v1501 = vadd.f32 %v633, %v1429
        %v1502 = vadd.f32 %v731, %v1431
        %v1503 = vadd.f32 %v733, %v1433
        %v1504 = vadd.f32 %v735, %v1435
        %v1505 = vadd.f32 %v737, %v1437
        %v1506 = vadd.f32 %v739, %v1439
        %v1507 = vadd.f32 %v741, %v1441
        %v1508 = vadd.f32 %v743, %v1443
        %v1509 = vadd.f32 %v745, %v1445
        %v1510 = vmul.f32 %v1478, 0.5
        %v1511 = vmul.f32 %v1479, 0.5
        %v1512 = vmul.f32 %v1480, 0.5
        %v1513 = vmul.f32 %v1481, 0.5
        %v1514 = vmul.f32 %v1482, 0.5
        %v1515 = vmul.f32 %v1483, 0.5
        %v1516 = vmul.f32 %v1484, 0.5
        %v1517 = vmul.f32 %v1485, 0.5
        %v1518 = vmul.f32 %v1486, 0.5
        %v1519 = vmul.f32 %v1487, 0.5
        %v1520 = vmul.f32 %v1488, 0.5
        %v1521 = vmul.f32 %v1489, 0.5
        %v1522 = vmul.f32 %v1490, 0.5
        %v1523 = vmul.f32 %v1491, 0.5
        %v1524 = vmul.f32 %v1492, 0.5
        %v1525 = vmul.f32 %v1493, 0.5
        %v1526 = vmul.f32 %v1494, 0.5
        %v1527 = vmul.f32 %v1495, 0.5
        %v1528 = vmul.f32 %v1496, 0.5
        %v1529 = vmul.f32 %v1497, 0.5
        %v1530 = vmul.f32 %v1498, 0.5
        %v1531 = vmul.f32 %v1499, 0.5
        %v1532 = vmul.f32 %v1500, 0.5
        %v1533 = vmul.f32 %v1501, 0.5
        %v1534 = vmul.f32 %v1502, 0.5
        %v1535 = vmul.f32 %v1503, 0.5
        %v1536 = vmul.f32 %v1504, 0.5
        %v1537 = vmul.f32 %v1505, 0.5
        %v1538 = vmul.f32 %v1506, 0.5
        %v1539 = vmul.f32 %v1507, 0.5
        %v1540 = vmul.f32 %v1508, 0.5
        %v1541 = vmul.f32 %v1509, 0.5
        %1574 = vset.pattern.permute.xlu0 0
        %1575 = vperm.xlu0 %1574, %v1510
        %v1576 = vpop.permute.xlu0 %1575
        %1577 = vset.pattern.permute.xlu0 0
        %1578 = vperm.xlu0 %1577, %v1511
        %v1579 = vpop.permute.xlu0 %1578
        %1580 = vset.pattern.permute.xlu0 0
        %1581 = vperm.xlu0 %1580, %v1512
        %v1582 = vpop.permute.xlu0 %1581
        %1583 = vset.pattern.permute.xlu0 0
        %1584 = vperm.xlu0 %1583, %v1513
        %v1585 = vpop.permute.xlu0 %1584
        %1586 = vset.pattern.permute.xlu0 0
        %1587 = vperm.xlu0 %1586, %v1514
        %v1588 = vpop.permute.xlu0 %1587
        %1589 = vset.pattern.permute.xlu0 0
        %1590 = vperm.xlu0 %1589, %v1515
        %v1591 = vpop.permute.xlu0 %1590
        %1592 = vset.pattern.permute.xlu0 0
        %1593 = vperm.xlu0 %1592, %v1516
        %v1594 = vpop.permute.xlu0 %1593
        %1595 = vset.pattern.permute.xlu0 0
        %1596 = vperm.xlu0 %1595, %v1517
        %v1597 = vpop.permute.xlu0 %1596
        %1598 = vset.pattern.permute.xlu0 0
        %1599 = vperm.xlu0 %1598, %v1518
        %v1600 = vpop.permute.xlu0 %1599
        %1601 = vset.pattern.permute.xlu0 0
        %1602 = vperm.xlu0 %1601, %v1519
        %v1603 = vpop.permute.xlu0 %1602
        %1604 = vset.pattern.permute.xlu0 0
        %1605 = vperm.xlu0 %1604, %v1520
        %v1606 = vpop.permute.xlu0 %1605
        %1607 = vset.pattern.permute.xlu0 0
        %1608 = vperm.xlu0 %1607, %v1521
        %v1609 = vpop.permute.xlu0 %1608
        %1610 = vset.pattern.permute.xlu0 0
        %1611 = vperm.xlu0 %1610, %v1522
        %v1612 = vpop.permute.xlu0 %1611
        %1613 = vset.pattern.permute.xlu0 0
        %1614 = vperm.xlu0 %1613, %v1523
        %v1615 = vpop.permute.xlu0 %1614
        %1616 = vset.pattern.permute.xlu0 0
        %1617 = vperm.xlu0 %1616, %v1524
        %v1618 = vpop.permute.xlu0 %1617
        %1619 = vset.pattern.permute.xlu0 0
        %1620 = vperm.xlu0 %1619, %v1525
        %v1621 = vpop.permute.xlu0 %1620
        %1622 = vset.pattern.permute.xlu0 0
        %1623 = vperm.xlu0 %1622, %v1526
        %v1624 = vpop.permute.xlu0 %1623
        %1625 = vset.pattern.permute.xlu0 0
        %1626 = vperm.xlu0 %1625, %v1527
        %v1627 = vpop.permute.xlu0 %1626
        %1628 = vset.pattern.permute.xlu0 0
        %1629 = vperm.xlu0 %1628, %v1528
        %v1630 = vpop.permute.xlu0 %1629
        %1631 = vset.pattern.permute.xlu0 0
        %1632 = vperm.xlu0 %1631, %v1529
        %v1633 = vpop.permute.xlu0 %1632
        %1634 = vset.pattern.permute.xlu0 0
        %1635 = vperm.xlu0 %1634, %v1530
        %v1636 = vpop.permute.xlu0 %1635
        %1637 = vset.pattern.permute.xlu0 0
        %1638 = vperm.xlu0 %1637, %v1531
        %v1639 = vpop.permute.xlu0 %1638
        %1640 = vset.pattern.permute.xlu0 0
        %1641 = vperm.xlu0 %1640, %v1532
        %v1642 = vpop.permute.xlu0 %1641
        %1643 = vset.pattern.permute.xlu0 0
        %1644 = vperm.xlu0 %1643, %v1533
        %v1645 = vpop.permute.xlu0 %1644
        %1646 = vset.pattern.permute.xlu0 0
        %1647 = vperm.xlu0 %1646, %v1534
        %v1648 = vpop.permute.xlu0 %1647
        %1649 = vset.pattern.permute.xlu0 0
        %1650 = vperm.xlu0 %1649, %v1535
        %v1651 = vpop.permute.xlu0 %1650
        %1652 = vset.pattern.permute.xlu0 0
        %1653 = vperm.xlu0 %1652, %v1536
        %v1654 = vpop.permute.xlu0 %1653
        %1655 = vset.pattern.permute.xlu0 0
        %1656 = vperm.xlu0 %1655, %v1537
        %v1657 = vpop.permute.xlu0 %1656
        %1658 = vset.pattern.permute.xlu0 0
        %1659 = vperm.xlu0 %1658, %v1538
        %v1660 = vpop.permute.xlu0 %1659
        %1661 = vset.pattern.permute.xlu0 0
        %1662 = vperm.xlu0 %1661, %v1539
        %v1663 = vpop.permute.xlu0 %1662
        %1664 = vset.pattern.permute.xlu0 0
        %1665 = vperm.xlu0 %1664, %v1540
        %v1666 = vpop.permute.xlu0 %1665
        %1667 = vset.pattern.permute.xlu0 0
        %1668 = vperm.xlu0 %1667, %v1541
        %v1669 = vpop.permute.xlu0 %1668
        %v1670 = vlaneseq
        %v1671 = vand.u32 %v1670, 127
        %v1672 = vperm.slane %v1576, %v1671
        %v1673 = vperm.slane %v1579, %v1671
        %v1674 = vperm.slane %v1582, %v1671
        %v1675 = vperm.slane %v1585, %v1671
        %v1676 = vperm.slane %v1588, %v1671
        %v1677 = vperm.slane %v1591, %v1671
        %v1678 = vperm.slane %v1594, %v1671
        %v1679 = vperm.slane %v1597, %v1671
        %v1680 = vperm.slane %v1600, %v1671
        %v1681 = vperm.slane %v1603, %v1671
        %v1682 = vperm.slane %v1606, %v1671
        %v1683 = vperm.slane %v1609, %v1671
        %v1684 = vperm.slane %v1612, %v1671
        %v1685 = vperm.slane %v1615, %v1671
        %v1686 = vperm.slane %v1618, %v1671
        %v1687 = vperm.slane %v1621, %v1671
        %v1688 = vperm.slane %v1624, %v1671
        %v1689 = vperm.slane %v1627, %v1671
        %v1690 = vperm.slane %v1630, %v1671
        %v1691 = vperm.slane %v1633, %v1671
        %v1692 = vperm.slane %v1636, %v1671
        %v1693 = vperm.slane %v1639, %v1671
        %v1694 = vperm.slane %v1642, %v1671
        %v1695 = vperm.slane %v1645, %v1671
        %v1696 = vperm.slane %v1648, %v1671
        %v1697 = vperm.slane %v1651, %v1671
        %v1698 = vperm.slane %v1654, %v1671
        %v1699 = vperm.slane %v1657, %v1671
        %v1700 = vperm.slane %v1660, %v1671
        %v1701 = vperm.slane %v1663, %v1671
        %v1702 = vperm.slane %v1666, %v1671
        %v1703 = vperm.slane %v1669, %v1671
        %vm1704 = vcmask 1041409
        %v1705 = vsel %vm1704, %v1673, %v1672
        %vm1706 = vcmask 1042434
        %v1707 = vsel %vm1706, %v1674, %v1705
        %vm1708 = vcmask 1043459
        %v1709 = vsel %vm1708, %v1675, %v1707
        %vm1710 = vcmask 1044484
        %v1711 = vsel %vm1710, %v1676, %v1709
        %vm1712 = vcmask 1045509
        %v1713 = vsel %vm1712, %v1677, %v1711
        %vm1714 = vcmask 1046534
        %v1715 = vsel %vm1714, %v1678, %v1713
        %vm1716 = vcmask 1047559
        %v1717 = vsel %vm1716, %v1679, %v1715
        %v1718 = vsel %vm1704, %v1681, %v1680
        %v1719 = vsel %vm1706, %v1682, %v1718
        %v1720 = vsel %vm1708, %v1683, %v1719
        %v1721 = vsel %vm1710, %v1684, %v1720
        %v1722 = vsel %vm1712, %v1685, %v1721
        %v1723 = vsel %vm1714, %v1686, %v1722
        %v1724 = vsel %vm1716, %v1687, %v1723
        %v1725 = vsel %vm1704, %v1689, %v1688
        %v1726 = vsel %vm1706, %v1690, %v1725
        %v1727 = vsel %vm1708, %v1691, %v1726
        %v1728 = vsel %vm1710, %v1692, %v1727
        %v1729 = vsel %vm1712, %v1693, %v1728
        %v1730 = vsel %vm1714, %v1694, %v1729
        %v1731 = vsel %vm1716, %v1695, %v1730
        %v1732 = vsel %vm1704, %v1697, %v1696
        %v1733 = vsel %vm1706, %v1698, %v1732
        %v1734 = vsel %vm1708, %v1699, %v1733
        %v1735 = vsel %vm1710, %v1700, %v1734
        %v1736 = vsel %vm1712, %v1701, %v1735
        %v1737 = vsel %vm1714, %v1702, %v1736
        %v1738 = vsel %vm1716, %v1703, %v1737
        %vm1743 = vcmask 64512
        %1744 = vst.msk [vmem:[%s166] sm:$0xff] %vm1743, %v1717
        %1745 = vst.msk [vmem:[%s166 + $0x8] sm:$0xff] %vm1743, %v1724
        %1746 = vst.msk [vmem:[%s166 + $0x10] sm:$0xff] %vm1743, %v1731
        %1747 = vst.msk [vmem:[%s166 + $0x18] sm:$0xff] %vm1743, %v1738
        %1748 = vrot.lane.b32.xlu0 %v395, 1
        %v1749 = vpop.permute.xlu0 %1748
        %1750 = vrot.lane.b32.xlu0 %v397, 1
        %v1751 = vpop.permute.xlu0 %1750
        %1752 = vrot.lane.b32.xlu0 %v399, 1
        %v1753 = vpop.permute.xlu0 %1752
        %1754 = vrot.lane.b32.xlu0 %v401, 1
        %v1755 = vpop.permute.xlu0 %1754
        %1756 = vrot.lane.b32.xlu0 %v403, 1
        %v1757 = vpop.permute.xlu0 %1756
        %1758 = vrot.lane.b32.xlu0 %v405, 1
        %v1759 = vpop.permute.xlu0 %1758
        %1760 = vrot.lane.b32.xlu0 %v407, 1
        %v1761 = vpop.permute.xlu0 %1760
        %1762 = vrot.lane.b32.xlu0 %v409, 1
        %v1763 = vpop.permute.xlu0 %1762
        %1764 = vrot.lane.b32.xlu0 %v507, 1
        %v1765 = vpop.permute.xlu0 %1764
        %1766 = vrot.lane.b32.xlu0 %v509, 1
        %v1767 = vpop.permute.xlu0 %1766
        %1768 = vrot.lane.b32.xlu0 %v511, 1
        %v1769 = vpop.permute.xlu0 %1768
        %1770 = vrot.lane.b32.xlu0 %v513, 1
        %v1771 = vpop.permute.xlu0 %1770
        %1772 = vrot.lane.b32.xlu0 %v515, 1
        %v1773 = vpop.permute.xlu0 %1772
        %1774 = vrot.lane.b32.xlu0 %v517, 1
        %v1775 = vpop.permute.xlu0 %1774
        %1776 = vrot.lane.b32.xlu0 %v519, 1
        %v1777 = vpop.permute.xlu0 %1776
        %1778 = vrot.lane.b32.xlu0 %v521, 1
        %v1779 = vpop.permute.xlu0 %1778
        %1780 = vrot.lane.b32.xlu0 %v619, 1
        %v1781 = vpop.permute.xlu0 %1780
        %1782 = vrot.lane.b32.xlu0 %v621, 1
        %v1783 = vpop.permute.xlu0 %1782
        %1784 = vrot.lane.b32.xlu0 %v623, 1
        %v1785 = vpop.permute.xlu0 %1784
        %1786 = vrot.lane.b32.xlu0 %v625, 1
        %v1787 = vpop.permute.xlu0 %1786
        %1788 = vrot.lane.b32.xlu0 %v627, 1
        %v1789 = vpop.permute.xlu0 %1788
        %1790 = vrot.lane.b32.xlu0 %v629, 1
        %v1791 = vpop.permute.xlu0 %1790
        %1792 = vrot.lane.b32.xlu0 %v631, 1
        %v1793 = vpop.permute.xlu0 %1792
        %1794 = vrot.lane.b32.xlu0 %v633, 1
        %v1795 = vpop.permute.xlu0 %1794
        %1796 = vrot.lane.b32.xlu0 %v731, 1
        %v1797 = vpop.permute.xlu0 %1796
        %1798 = vrot.lane.b32.xlu0 %v733, 1
        %v1799 = vpop.permute.xlu0 %1798
        %1800 = vrot.lane.b32.xlu0 %v735, 1
        %v1801 = vpop.permute.xlu0 %1800
        %1802 = vrot.lane.b32.xlu0 %v737, 1
        %v1803 = vpop.permute.xlu0 %1802
        %1804 = vrot.lane.b32.xlu0 %v739, 1
        %v1805 = vpop.permute.xlu0 %1804
        %1806 = vrot.lane.b32.xlu0 %v741, 1
        %v1807 = vpop.permute.xlu0 %1806
        %1808 = vrot.lane.b32.xlu0 %v743, 1
        %v1809 = vpop.permute.xlu0 %1808
        %1810 = vrot.lane.b32.xlu0 %v745, 1
        %v1811 = vpop.permute.xlu0 %1810
        %v1844 = vsub.f32 %v395, %v1749
        %v1845 = vsub.f32 %v397, %v1751
        %v1846 = vsub.f32 %v399, %v1753
        %v1847 = vsub.f32 %v401, %v1755
        %v1848 = vsub.f32 %v403, %v1757
        %v1849 = vsub.f32 %v405, %v1759
        %v1850 = vsub.f32 %v407, %v1761
        %v1851 = vsub.f32 %v409, %v1763
        %v1852 = vsub.f32 %v507, %v1765
        %v1853 = vsub.f32 %v509, %v1767
        %v1854 = vsub.f32 %v511, %v1769
        %v1855 = vsub.f32 %v513, %v1771
        %v1856 = vsub.f32 %v515, %v1773
        %v1857 = vsub.f32 %v517, %v1775
        %v1858 = vsub.f32 %v519, %v1777
        %v1859 = vsub.f32 %v521, %v1779
        %v1860 = vsub.f32 %v619, %v1781
        %v1861 = vsub.f32 %v621, %v1783
        %v1862 = vsub.f32 %v623, %v1785
        %v1863 = vsub.f32 %v625, %v1787
        %v1864 = vsub.f32 %v627, %v1789
        %v1865 = vsub.f32 %v629, %v1791
        %v1866 = vsub.f32 %v631, %v1793
        %v1867 = vsub.f32 %v633, %v1795
        %v1868 = vsub.f32 %v731, %v1797
        %v1869 = vsub.f32 %v733, %v1799
        %v1870 = vsub.f32 %v735, %v1801
        %v1871 = vsub.f32 %v737, %v1803
        %v1872 = vsub.f32 %v739, %v1805
        %v1873 = vsub.f32 %v741, %v1807
        %v1874 = vsub.f32 %v743, %v1809
        %v1875 = vsub.f32 %v745, %v1811
        %v1876 = vmul.f32 %v1844, 0.5
        %v1877 = vmul.f32 %v1845, 0.5
        %v1878 = vmul.f32 %v1846, 0.5
        %v1879 = vmul.f32 %v1847, 0.5
        %v1880 = vmul.f32 %v1848, 0.5
        %v1881 = vmul.f32 %v1849, 0.5
        %v1882 = vmul.f32 %v1850, 0.5
        %v1883 = vmul.f32 %v1851, 0.5
        %v1884 = vmul.f32 %v1852, 0.5
        %v1885 = vmul.f32 %v1853, 0.5
        %v1886 = vmul.f32 %v1854, 0.5
        %v1887 = vmul.f32 %v1855, 0.5
        %v1888 = vmul.f32 %v1856, 0.5
        %v1889 = vmul.f32 %v1857, 0.5
        %v1890 = vmul.f32 %v1858, 0.5
        %v1891 = vmul.f32 %v1859, 0.5
        %v1892 = vmul.f32 %v1860, 0.5
        %v1893 = vmul.f32 %v1861, 0.5
        %v1894 = vmul.f32 %v1862, 0.5
        %v1895 = vmul.f32 %v1863, 0.5
        %v1896 = vmul.f32 %v1864, 0.5
        %v1897 = vmul.f32 %v1865, 0.5
        %v1898 = vmul.f32 %v1866, 0.5
        %v1899 = vmul.f32 %v1867, 0.5
        %v1900 = vmul.f32 %v1868, 0.5
        %v1901 = vmul.f32 %v1869, 0.5
        %v1902 = vmul.f32 %v1870, 0.5
        %v1903 = vmul.f32 %v1871, 0.5
        %v1904 = vmul.f32 %v1872, 0.5
        %v1905 = vmul.f32 %v1873, 0.5
        %v1906 = vmul.f32 %v1874, 0.5
        %v1907 = vmul.f32 %v1875, 0.5
        %1940 = vset.pattern.permute.xlu0 1
        %1941 = vperm.xlu0 %1940, %v1876
        %v1942 = vpop.permute.xlu0 %1941
        %1943 = vset.pattern.permute.xlu0 1
        %1944 = vperm.xlu0 %1943, %v1877
        %v1945 = vpop.permute.xlu0 %1944
        %1946 = vset.pattern.permute.xlu0 1
        %1947 = vperm.xlu0 %1946, %v1878
        %v1948 = vpop.permute.xlu0 %1947
        %1949 = vset.pattern.permute.xlu0 1
        %1950 = vperm.xlu0 %1949, %v1879
        %v1951 = vpop.permute.xlu0 %1950
        %1952 = vset.pattern.permute.xlu0 1
        %1953 = vperm.xlu0 %1952, %v1880
        %v1954 = vpop.permute.xlu0 %1953
        %1955 = vset.pattern.permute.xlu0 1
        %1956 = vperm.xlu0 %1955, %v1881
        %v1957 = vpop.permute.xlu0 %1956
        %1958 = vset.pattern.permute.xlu0 1
        %1959 = vperm.xlu0 %1958, %v1882
        %v1960 = vpop.permute.xlu0 %1959
        %1961 = vset.pattern.permute.xlu0 1
        %1962 = vperm.xlu0 %1961, %v1883
        %v1963 = vpop.permute.xlu0 %1962
        %1964 = vset.pattern.permute.xlu0 1
        %1965 = vperm.xlu0 %1964, %v1884
        %v1966 = vpop.permute.xlu0 %1965
        %1967 = vset.pattern.permute.xlu0 1
        %1968 = vperm.xlu0 %1967, %v1885
        %v1969 = vpop.permute.xlu0 %1968
        %1970 = vset.pattern.permute.xlu0 1
        %1971 = vperm.xlu0 %1970, %v1886
        %v1972 = vpop.permute.xlu0 %1971
        %1973 = vset.pattern.permute.xlu0 1
        %1974 = vperm.xlu0 %1973, %v1887
        %v1975 = vpop.permute.xlu0 %1974
        %1976 = vset.pattern.permute.xlu0 1
        %1977 = vperm.xlu0 %1976, %v1888
        %v1978 = vpop.permute.xlu0 %1977
        %1979 = vset.pattern.permute.xlu0 1
        %1980 = vperm.xlu0 %1979, %v1889
        %v1981 = vpop.permute.xlu0 %1980
        %1982 = vset.pattern.permute.xlu0 1
        %1983 = vperm.xlu0 %1982, %v1890
        %v1984 = vpop.permute.xlu0 %1983
        %1985 = vset.pattern.permute.xlu0 1
        %1986 = vperm.xlu0 %1985, %v1891
        %v1987 = vpop.permute.xlu0 %1986
        %1988 = vset.pattern.permute.xlu0 1
        %1989 = vperm.xlu0 %1988, %v1892
        %v1990 = vpop.permute.xlu0 %1989
        %1991 = vset.pattern.permute.xlu0 1
        %1992 = vperm.xlu0 %1991, %v1893
        %v1993 = vpop.permute.xlu0 %1992
        %1994 = vset.pattern.permute.xlu0 1
        %1995 = vperm.xlu0 %1994, %v1894
        %v1996 = vpop.permute.xlu0 %1995
        %1997 = vset.pattern.permute.xlu0 1
        %1998 = vperm.xlu0 %1997, %v1895
        %v1999 = vpop.permute.xlu0 %1998
        %2000 = vset.pattern.permute.xlu0 1
        %2001 = vperm.xlu0 %2000, %v1896
        %v2002 = vpop.permute.xlu0 %2001
        %2003 = vset.pattern.permute.xlu0 1
        %2004 = vperm.xlu0 %2003, %v1897
        %v2005 = vpop.permute.xlu0 %2004
        %2006 = vset.pattern.permute.xlu0 1
        %2007 = vperm.xlu0 %2006, %v1898
        %v2008 = vpop.permute.xlu0 %2007
        %2009 = vset.pattern.permute.xlu0 1
        %2010 = vperm.xlu0 %2009, %v1899
        %v2011 = vpop.permute.xlu0 %2010
        %2012 = vset.pattern.permute.xlu0 1
        %2013 = vperm.xlu0 %2012, %v1900
        %v2014 = vpop.permute.xlu0 %2013
        %2015 = vset.pattern.permute.xlu0 1
        %2016 = vperm.xlu0 %2015, %v1901
        %v2017 = vpop.permute.xlu0 %2016
        %2018 = vset.pattern.permute.xlu0 1
        %2019 = vperm.xlu0 %2018, %v1902
        %v2020 = vpop.permute.xlu0 %2019
        %2021 = vset.pattern.permute.xlu0 1
        %2022 = vperm.xlu0 %2021, %v1903
        %v2023 = vpop.permute.xlu0 %2022
        %2024 = vset.pattern.permute.xlu0 1
        %2025 = vperm.xlu0 %2024, %v1904
        %v2026 = vpop.permute.xlu0 %2025
        %2027 = vset.pattern.permute.xlu0 1
        %2028 = vperm.xlu0 %2027, %v1905
        %v2029 = vpop.permute.xlu0 %2028
        %2030 = vset.pattern.permute.xlu0 1
        %2031 = vperm.xlu0 %2030, %v1906
        %v2032 = vpop.permute.xlu0 %2031
        %2033 = vset.pattern.permute.xlu0 1
        %2034 = vperm.xlu0 %2033, %v1907
        %v2035 = vpop.permute.xlu0 %2034
        %v2036 = vperm.slane %v1942, %v1671
        %v2037 = vperm.slane %v1945, %v1671
        %v2038 = vperm.slane %v1948, %v1671
        %v2039 = vperm.slane %v1951, %v1671
        %v2040 = vperm.slane %v1954, %v1671
        %v2041 = vperm.slane %v1957, %v1671
        %v2042 = vperm.slane %v1960, %v1671
        %v2043 = vperm.slane %v1963, %v1671
        %v2044 = vperm.slane %v1966, %v1671
        %v2045 = vperm.slane %v1969, %v1671
        %v2046 = vperm.slane %v1972, %v1671
        %v2047 = vperm.slane %v1975, %v1671
        %v2048 = vperm.slane %v1978, %v1671
        %v2049 = vperm.slane %v1981, %v1671
        %v2050 = vperm.slane %v1984, %v1671
        %v2051 = vperm.slane %v1987, %v1671
        %v2052 = vperm.slane %v1990, %v1671
        %v2053 = vperm.slane %v1993, %v1671
        %v2054 = vperm.slane %v1996, %v1671
        %v2055 = vperm.slane %v1999, %v1671
        %v2056 = vperm.slane %v2002, %v1671
        %v2057 = vperm.slane %v2005, %v1671
        %v2058 = vperm.slane %v2008, %v1671
        %v2059 = vperm.slane %v2011, %v1671
        %v2060 = vperm.slane %v2014, %v1671
        %v2061 = vperm.slane %v2017, %v1671
        %v2062 = vperm.slane %v2020, %v1671
        %v2063 = vperm.slane %v2023, %v1671
        %v2064 = vperm.slane %v2026, %v1671
        %v2065 = vperm.slane %v2029, %v1671
        %v2066 = vperm.slane %v2032, %v1671
        %v2067 = vperm.slane %v2035, %v1671
        %v2068 = vsel %vm1704, %v2037, %v2036
        %v2069 = vsel %vm1706, %v2038, %v2068
        %v2070 = vsel %vm1708, %v2039, %v2069
        %v2071 = vsel %vm1710, %v2040, %v2070
        %v2072 = vsel %vm1712, %v2041, %v2071
        %v2073 = vsel %vm1714, %v2042, %v2072
        %v2074 = vsel %vm1716, %v2043, %v2073
        %v2075 = vsel %vm1704, %v2045, %v2044
        %v2076 = vsel %vm1706, %v2046, %v2075
        %v2077 = vsel %vm1708, %v2047, %v2076
        %v2078 = vsel %vm1710, %v2048, %v2077
        %v2079 = vsel %vm1712, %v2049, %v2078
        %v2080 = vsel %vm1714, %v2050, %v2079
        %v2081 = vsel %vm1716, %v2051, %v2080
        %v2082 = vsel %vm1704, %v2053, %v2052
        %v2083 = vsel %vm1706, %v2054, %v2082
        %v2084 = vsel %vm1708, %v2055, %v2083
        %v2085 = vsel %vm1710, %v2056, %v2084
        %v2086 = vsel %vm1712, %v2057, %v2085
        %v2087 = vsel %vm1714, %v2058, %v2086
        %v2088 = vsel %vm1716, %v2059, %v2087
        %v2089 = vsel %vm1704, %v2061, %v2060
        %v2090 = vsel %vm1706, %v2062, %v2089
        %v2091 = vsel %vm1708, %v2063, %v2090
        %v2092 = vsel %vm1710, %v2064, %v2091
        %v2093 = vsel %vm1712, %v2065, %v2092
        %v2094 = vsel %vm1714, %v2066, %v2093
        %v2095 = vsel %vm1716, %v2067, %v2094
        %s2100 = scalar_lea.vmem %s166, 32 [#allocation5]
        %2101 = vst.msk [vmem:[%s2100] sm:$0xff] %vm1743, %v2074
        %2102 = vst.msk [vmem:[%s2100 + $0x8] sm:$0xff] %vm1743, %v2081
        %2103 = vst.msk [vmem:[%s2100 + $0x10] sm:$0xff] %vm1743, %v2088
        %2104 = vst.msk [vmem:[%s2100 + $0x18] sm:$0xff] %vm1743, %v2095
        %2137 = vrot.lane.b32.xlu0 %v999, 127
        %v2138 = vpop.permute.xlu0 %2137
        %2139 = vrot.lane.b32.xlu0 %v1001, 127
        %v2140 = vpop.permute.xlu0 %2139
        %2141 = vrot.lane.b32.xlu0 %v1003, 127
        %v2142 = vpop.permute.xlu0 %2141
        %2143 = vrot.lane.b32.xlu0 %v1005, 127
        %v2144 = vpop.permute.xlu0 %2143
        %2145 = vrot.lane.b32.xlu0 %v1007, 127
        %v2146 = vpop.permute.xlu0 %2145
        %2147 = vrot.lane.b32.xlu0 %v1009, 127
        %v2148 = vpop.permute.xlu0 %2147
        %2149 = vrot.lane.b32.xlu0 %v1011, 127
        %v2150 = vpop.permute.xlu0 %2149
        %2151 = vrot.lane.b32.xlu0 %v1013, 127
        %v2152 = vpop.permute.xlu0 %2151
        %2153 = vrot.lane.b32.xlu0 %v1111, 127
        %v2154 = vpop.permute.xlu0 %2153
        %2155 = vrot.lane.b32.xlu0 %v1113, 127
        %v2156 = vpop.permute.xlu0 %2155
        %2157 = vrot.lane.b32.xlu0 %v1115, 127
        %v2158 = vpop.permute.xlu0 %2157
        %2159 = vrot.lane.b32.xlu0 %v1117, 127
        %v2160 = vpop.permute.xlu0 %2159
        %2161 = vrot.lane.b32.xlu0 %v1119, 127
        %v2162 = vpop.permute.xlu0 %2161
        %2163 = vrot.lane.b32.xlu0 %v1121, 127
        %v2164 = vpop.permute.xlu0 %2163
        %2165 = vrot.lane.b32.xlu0 %v1123, 127
        %v2166 = vpop.permute.xlu0 %2165
        %2167 = vrot.lane.b32.xlu0 %v1125, 127
        %v2168 = vpop.permute.xlu0 %2167
        %2169 = vrot.lane.b32.xlu0 %v1223, 127
        %v2170 = vpop.permute.xlu0 %2169
        %2171 = vrot.lane.b32.xlu0 %v1225, 127
        %v2172 = vpop.permute.xlu0 %2171
        %2173 = vrot.lane.b32.xlu0 %v1227, 127
        %v2174 = vpop.permute.xlu0 %2173
        %2175 = vrot.lane.b32.xlu0 %v1229, 127
        %v2176 = vpop.permute.xlu0 %2175
        %2177 = vrot.lane.b32.xlu0 %v1231, 127
        %v2178 = vpop.permute.xlu0 %2177
        %2179 = vrot.lane.b32.xlu0 %v1233, 127
        %v2180 = vpop.permute.xlu0 %2179
        %2181 = vrot.lane.b32.xlu0 %v1235, 127
        %v2182 = vpop.permute.xlu0 %2181
        %2183 = vrot.lane.b32.xlu0 %v1237, 127
        %v2184 = vpop.permute.xlu0 %2183
        %2185 = vrot.lane.b32.xlu0 %v1335, 127
        %v2186 = vpop.permute.xlu0 %2185
        %2187 = vrot.lane.b32.xlu0 %v1337, 127
        %v2188 = vpop.permute.xlu0 %2187
        %2189 = vrot.lane.b32.xlu0 %v1339, 127
        %v2190 = vpop.permute.xlu0 %2189
        %2191 = vrot.lane.b32.xlu0 %v1341, 127
        %v2192 = vpop.permute.xlu0 %2191
        %2193 = vrot.lane.b32.xlu0 %v1343, 127
        %v2194 = vpop.permute.xlu0 %2193
        %2195 = vrot.lane.b32.xlu0 %v1345, 127
        %v2196 = vpop.permute.xlu0 %2195
        %2197 = vrot.lane.b32.xlu0 %v1347, 127
        %v2198 = vpop.permute.xlu0 %2197
        %2199 = vrot.lane.b32.xlu0 %v1349, 127
        %v2200 = vpop.permute.xlu0 %2199
        %v2233 = vadd.f32 %v999, %v2138
        %v2234 = vadd.f32 %v1001, %v2140
        %v2235 = vadd.f32 %v1003, %v2142
        %v2236 = vadd.f32 %v1005, %v2144
        %v2237 = vadd.f32 %v1007, %v2146
        %v2238 = vadd.f32 %v1009, %v2148
        %v2239 = vadd.f32 %v1011, %v2150
        %v2240 = vadd.f32 %v1013, %v2152
        %v2241 = vadd.f32 %v1111, %v2154
        %v2242 = vadd.f32 %v1113, %v2156
        %v2243 = vadd.f32 %v1115, %v2158
        %v2244 = vadd.f32 %v1117, %v2160
        %v2245 = vadd.f32 %v1119, %v2162
        %v2246 = vadd.f32 %v1121, %v2164
        %v2247 = vadd.f32 %v1123, %v2166
        %v2248 = vadd.f32 %v1125, %v2168
        %v2249 = vadd.f32 %v1223, %v2170
        %v2250 = vadd.f32 %v1225, %v2172
        %v2251 = vadd.f32 %v1227, %v2174
        %v2252 = vadd.f32 %v1229, %v2176
        %v2253 = vadd.f32 %v1231, %v2178
        %v2254 = vadd.f32 %v1233, %v2180
        %v2255 = vadd.f32 %v1235, %v2182
        %v2256 = vadd.f32 %v1237, %v2184
        %v2257 = vadd.f32 %v1335, %v2186
        %v2258 = vadd.f32 %v1337, %v2188
        %v2259 = vadd.f32 %v1339, %v2190
        %v2260 = vadd.f32 %v1341, %v2192
        %v2261 = vadd.f32 %v1343, %v2194
        %v2262 = vadd.f32 %v1345, %v2196
        %v2263 = vadd.f32 %v1347, %v2198
        %v2264 = vadd.f32 %v1349, %v2200
        %v2265 = vmul.f32 %v2233, 0.5
        %v2266 = vmul.f32 %v2234, 0.5
        %v2267 = vmul.f32 %v2235, 0.5
        %v2268 = vmul.f32 %v2236, 0.5
        %v2269 = vmul.f32 %v2237, 0.5
        %v2270 = vmul.f32 %v2238, 0.5
        %v2271 = vmul.f32 %v2239, 0.5
        %v2272 = vmul.f32 %v2240, 0.5
        %v2273 = vmul.f32 %v2241, 0.5
        %v2274 = vmul.f32 %v2242, 0.5
        %v2275 = vmul.f32 %v2243, 0.5
        %v2276 = vmul.f32 %v2244, 0.5
        %v2277 = vmul.f32 %v2245, 0.5
        %v2278 = vmul.f32 %v2246, 0.5
        %v2279 = vmul.f32 %v2247, 0.5
        %v2280 = vmul.f32 %v2248, 0.5
        %v2281 = vmul.f32 %v2249, 0.5
        %v2282 = vmul.f32 %v2250, 0.5
        %v2283 = vmul.f32 %v2251, 0.5
        %v2284 = vmul.f32 %v2252, 0.5
        %v2285 = vmul.f32 %v2253, 0.5
        %v2286 = vmul.f32 %v2254, 0.5
        %v2287 = vmul.f32 %v2255, 0.5
        %v2288 = vmul.f32 %v2256, 0.5
        %v2289 = vmul.f32 %v2257, 0.5
        %v2290 = vmul.f32 %v2258, 0.5
        %v2291 = vmul.f32 %v2259, 0.5
        %v2292 = vmul.f32 %v2260, 0.5
        %v2293 = vmul.f32 %v2261, 0.5
        %v2294 = vmul.f32 %v2262, 0.5
        %v2295 = vmul.f32 %v2263, 0.5
        %v2296 = vmul.f32 %v2264, 0.5
        %2329 = vset.pattern.permute.xlu0 0
        %2330 = vperm.xlu0 %2329, %v2265
        %v2331 = vpop.permute.xlu0 %2330
        %2332 = vset.pattern.permute.xlu0 0
        %2333 = vperm.xlu0 %2332, %v2266
        %v2334 = vpop.permute.xlu0 %2333
        %2335 = vset.pattern.permute.xlu0 0
        %2336 = vperm.xlu0 %2335, %v2267
        %v2337 = vpop.permute.xlu0 %2336
        %2338 = vset.pattern.permute.xlu0 0
        %2339 = vperm.xlu0 %2338, %v2268
        %v2340 = vpop.permute.xlu0 %2339
        %2341 = vset.pattern.permute.xlu0 0
        %2342 = vperm.xlu0 %2341, %v2269
        %v2343 = vpop.permute.xlu0 %2342
        %2344 = vset.pattern.permute.xlu0 0
        %2345 = vperm.xlu0 %2344, %v2270
        %v2346 = vpop.permute.xlu0 %2345
        %2347 = vset.pattern.permute.xlu0 0
        %2348 = vperm.xlu0 %2347, %v2271
        %v2349 = vpop.permute.xlu0 %2348
        %2350 = vset.pattern.permute.xlu0 0
        %2351 = vperm.xlu0 %2350, %v2272
        %v2352 = vpop.permute.xlu0 %2351
        %2353 = vset.pattern.permute.xlu0 0
        %2354 = vperm.xlu0 %2353, %v2273
        %v2355 = vpop.permute.xlu0 %2354
        %2356 = vset.pattern.permute.xlu0 0
        %2357 = vperm.xlu0 %2356, %v2274
        %v2358 = vpop.permute.xlu0 %2357
        %2359 = vset.pattern.permute.xlu0 0
        %2360 = vperm.xlu0 %2359, %v2275
        %v2361 = vpop.permute.xlu0 %2360
        %2362 = vset.pattern.permute.xlu0 0
        %2363 = vperm.xlu0 %2362, %v2276
        %v2364 = vpop.permute.xlu0 %2363
        %2365 = vset.pattern.permute.xlu0 0
        %2366 = vperm.xlu0 %2365, %v2277
        %v2367 = vpop.permute.xlu0 %2366
        %2368 = vset.pattern.permute.xlu0 0
        %2369 = vperm.xlu0 %2368, %v2278
        %v2370 = vpop.permute.xlu0 %2369
        %2371 = vset.pattern.permute.xlu0 0
        %2372 = vperm.xlu0 %2371, %v2279
        %v2373 = vpop.permute.xlu0 %2372
        %2374 = vset.pattern.permute.xlu0 0
        %2375 = vperm.xlu0 %2374, %v2280
        %v2376 = vpop.permute.xlu0 %2375
        %2377 = vset.pattern.permute.xlu0 0
        %2378 = vperm.xlu0 %2377, %v2281
        %v2379 = vpop.permute.xlu0 %2378
        %2380 = vset.pattern.permute.xlu0 0
        %2381 = vperm.xlu0 %2380, %v2282
        %v2382 = vpop.permute.xlu0 %2381
        %2383 = vset.pattern.permute.xlu0 0
        %2384 = vperm.xlu0 %2383, %v2283
        %v2385 = vpop.permute.xlu0 %2384
        %2386 = vset.pattern.permute.xlu0 0
        %2387 = vperm.xlu0 %2386, %v2284
        %v2388 = vpop.permute.xlu0 %2387
        %2389 = vset.pattern.permute.xlu0 0
        %2390 = vperm.xlu0 %2389, %v2285
        %v2391 = vpop.permute.xlu0 %2390
        %2392 = vset.pattern.permute.xlu0 0
        %2393 = vperm.xlu0 %2392, %v2286
        %v2394 = vpop.permute.xlu0 %2393
        %2395 = vset.pattern.permute.xlu0 0
        %2396 = vperm.xlu0 %2395, %v2287
        %v2397 = vpop.permute.xlu0 %2396
        %2398 = vset.pattern.permute.xlu0 0
        %2399 = vperm.xlu0 %2398, %v2288
        %v2400 = vpop.permute.xlu0 %2399
        %2401 = vset.pattern.permute.xlu0 0
        %2402 = vperm.xlu0 %2401, %v2289
        %v2403 = vpop.permute.xlu0 %2402
        %2404 = vset.pattern.permute.xlu0 0
        %2405 = vperm.xlu0 %2404, %v2290
        %v2406 = vpop.permute.xlu0 %2405
        %2407 = vset.pattern.permute.xlu0 0
        %2408 = vperm.xlu0 %2407, %v2291
        %v2409 = vpop.permute.xlu0 %2408
        %2410 = vset.pattern.permute.xlu0 0
        %2411 = vperm.xlu0 %2410, %v2292
        %v2412 = vpop.permute.xlu0 %2411
        %2413 = vset.pattern.permute.xlu0 0
        %2414 = vperm.xlu0 %2413, %v2293
        %v2415 = vpop.permute.xlu0 %2414
        %2416 = vset.pattern.permute.xlu0 0
        %2417 = vperm.xlu0 %2416, %v2294
        %v2418 = vpop.permute.xlu0 %2417
        %2419 = vset.pattern.permute.xlu0 0
        %2420 = vperm.xlu0 %2419, %v2295
        %v2421 = vpop.permute.xlu0 %2420
        %2422 = vset.pattern.permute.xlu0 0
        %2423 = vperm.xlu0 %2422, %v2296
        %v2424 = vpop.permute.xlu0 %2423
        %v2425 = vperm.slane %v2331, %v1671
        %v2426 = vperm.slane %v2334, %v1671
        %v2427 = vperm.slane %v2337, %v1671
        %v2428 = vperm.slane %v2340, %v1671
        %v2429 = vperm.slane %v2343, %v1671
        %v2430 = vperm.slane %v2346, %v1671
        %v2431 = vperm.slane %v2349, %v1671
        %v2432 = vperm.slane %v2352, %v1671
        %v2433 = vperm.slane %v2355, %v1671
        %v2434 = vperm.slane %v2358, %v1671
        %v2435 = vperm.slane %v2361, %v1671
        %v2436 = vperm.slane %v2364, %v1671
        %v2437 = vperm.slane %v2367, %v1671
        %v2438 = vperm.slane %v2370, %v1671
        %v2439 = vperm.slane %v2373, %v1671
        %v2440 = vperm.slane %v2376, %v1671
        %v2441 = vperm.slane %v2379, %v1671
        %v2442 = vperm.slane %v2382, %v1671
        %v2443 = vperm.slane %v2385, %v1671
        %v2444 = vperm.slane %v2388, %v1671
        %v2445 = vperm.slane %v2391, %v1671
        %v2446 = vperm.slane %v2394, %v1671
        %v2447 = vperm.slane %v2397, %v1671
        %v2448 = vperm.slane %v2400, %v1671
        %v2449 = vperm.slane %v2403, %v1671
        %v2450 = vperm.slane %v2406, %v1671
        %v2451 = vperm.slane %v2409, %v1671
        %v2452 = vperm.slane %v2412, %v1671
        %v2453 = vperm.slane %v2415, %v1671
        %v2454 = vperm.slane %v2418, %v1671
        %v2455 = vperm.slane %v2421, %v1671
        %v2456 = vperm.slane %v2424, %v1671
        %v2457 = vsel %vm1704, %v2426, %v2425
        %v2458 = vsel %vm1706, %v2427, %v2457
        %v2459 = vsel %vm1708, %v2428, %v2458
        %v2460 = vsel %vm1710, %v2429, %v2459
        %v2461 = vsel %vm1712, %v2430, %v2460
        %v2462 = vsel %vm1714, %v2431, %v2461
        %v2463 = vsel %vm1716, %v2432, %v2462
        %v2464 = vsel %vm1704, %v2434, %v2433
        %v2465 = vsel %vm1706, %v2435, %v2464
        %v2466 = vsel %vm1708, %v2436, %v2465
        %v2467 = vsel %vm1710, %v2437, %v2466
        %v2468 = vsel %vm1712, %v2438, %v2467
        %v2469 = vsel %vm1714, %v2439, %v2468
        %v2470 = vsel %vm1716, %v2440, %v2469
        %v2471 = vsel %vm1704, %v2442, %v2441
        %v2472 = vsel %vm1706, %v2443, %v2471
        %v2473 = vsel %vm1708, %v2444, %v2472
        %v2474 = vsel %vm1710, %v2445, %v2473
        %v2475 = vsel %vm1712, %v2446, %v2474
        %v2476 = vsel %vm1714, %v2447, %v2475
        %v2477 = vsel %vm1716, %v2448, %v2476
        %v2478 = vsel %vm1704, %v2450, %v2449
        %v2479 = vsel %vm1706, %v2451, %v2478
        %v2480 = vsel %vm1708, %v2452, %v2479
        %v2481 = vsel %vm1710, %v2453, %v2480
        %v2482 = vsel %vm1712, %v2454, %v2481
        %v2483 = vsel %vm1714, %v2455, %v2482
        %v2484 = vsel %vm1716, %v2456, %v2483
        %s2489 = scalar_lea.vmem %s166, 64 [#allocation5]
        %2490 = vst.msk [vmem:[%s2489] sm:$0xff] %vm1743, %v2463
        %2491 = vst.msk [vmem:[%s2489 + $0x8] sm:$0xff] %vm1743, %v2470
        %2492 = vst.msk [vmem:[%s2489 + $0x10] sm:$0xff] %vm1743, %v2477
        %2493 = vst.msk [vmem:[%s2489 + $0x18] sm:$0xff] %vm1743, %v2484
        %2494 = vrot.lane.b32.xlu0 %v999, 1
        %v2495 = vpop.permute.xlu0 %2494
        %2496 = vrot.lane.b32.xlu0 %v1001, 1
        %v2497 = vpop.permute.xlu0 %2496
        %2498 = vrot.lane.b32.xlu0 %v1003, 1
        %v2499 = vpop.permute.xlu0 %2498
        %2500 = vrot.lane.b32.xlu0 %v1005, 1
        %v2501 = vpop.permute.xlu0 %2500
        %2502 = vrot.lane.b32.xlu0 %v1007, 1
        %v2503 = vpop.permute.xlu0 %2502
        %2504 = vrot.lane.b32.xlu0 %v1009, 1
        %v2505 = vpop.permute.xlu0 %2504
        %2506 = vrot.lane.b32.xlu0 %v1011, 1
        %v2507 = vpop.permute.xlu0 %2506
        %2508 = vrot.lane.b32.xlu0 %v1013, 1
        %v2509 = vpop.permute.xlu0 %2508
        %2510 = vrot.lane.b32.xlu0 %v1111, 1
        %v2511 = vpop.permute.xlu0 %2510
        %2512 = vrot.lane.b32.xlu0 %v1113, 1
        %v2513 = vpop.permute.xlu0 %2512
        %2514 = vrot.lane.b32.xlu0 %v1115, 1
        %v2515 = vpop.permute.xlu0 %2514
        %2516 = vrot.lane.b32.xlu0 %v1117, 1
        %v2517 = vpop.permute.xlu0 %2516
        %2518 = vrot.lane.b32.xlu0 %v1119, 1
        %v2519 = vpop.permute.xlu0 %2518
        %2520 = vrot.lane.b32.xlu0 %v1121, 1
        %v2521 = vpop.permute.xlu0 %2520
        %2522 = vrot.lane.b32.xlu0 %v1123, 1
        %v2523 = vpop.permute.xlu0 %2522
        %2524 = vrot.lane.b32.xlu0 %v1125, 1
        %v2525 = vpop.permute.xlu0 %2524
        %2526 = vrot.lane.b32.xlu0 %v1223, 1
        %v2527 = vpop.permute.xlu0 %2526
        %2528 = vrot.lane.b32.xlu0 %v1225, 1
        %v2529 = vpop.permute.xlu0 %2528
        %2530 = vrot.lane.b32.xlu0 %v1227, 1
        %v2531 = vpop.permute.xlu0 %2530
        %2532 = vrot.lane.b32.xlu0 %v1229, 1
        %v2533 = vpop.permute.xlu0 %2532
        %2534 = vrot.lane.b32.xlu0 %v1231, 1
        %v2535 = vpop.permute.xlu0 %2534
        %2536 = vrot.lane.b32.xlu0 %v1233, 1
        %v2537 = vpop.permute.xlu0 %2536
        %2538 = vrot.lane.b32.xlu0 %v1235, 1
        %v2539 = vpop.permute.xlu0 %2538
        %2540 = vrot.lane.b32.xlu0 %v1237, 1
        %v2541 = vpop.permute.xlu0 %2540
        %2542 = vrot.lane.b32.xlu0 %v1335, 1
        %v2543 = vpop.permute.xlu0 %2542
        %2544 = vrot.lane.b32.xlu0 %v1337, 1
        %v2545 = vpop.permute.xlu0 %2544
        %2546 = vrot.lane.b32.xlu0 %v1339, 1
        %v2547 = vpop.permute.xlu0 %2546
        %2548 = vrot.lane.b32.xlu0 %v1341, 1
        %v2549 = vpop.permute.xlu0 %2548
        %2550 = vrot.lane.b32.xlu0 %v1343, 1
        %v2551 = vpop.permute.xlu0 %2550
        %2552 = vrot.lane.b32.xlu0 %v1345, 1
        %v2553 = vpop.permute.xlu0 %2552
        %2554 = vrot.lane.b32.xlu0 %v1347, 1
        %v2555 = vpop.permute.xlu0 %2554
        %2556 = vrot.lane.b32.xlu0 %v1349, 1
        %v2557 = vpop.permute.xlu0 %2556
        %v2590 = vsub.f32 %v999, %v2495
        %v2591 = vsub.f32 %v1001, %v2497
        %v2592 = vsub.f32 %v1003, %v2499
        %v2593 = vsub.f32 %v1005, %v2501
        %v2594 = vsub.f32 %v1007, %v2503
        %v2595 = vsub.f32 %v1009, %v2505
        %v2596 = vsub.f32 %v1011, %v2507
        %v2597 = vsub.f32 %v1013, %v2509
        %v2598 = vsub.f32 %v1111, %v2511
        %v2599 = vsub.f32 %v1113, %v2513
        %v2600 = vsub.f32 %v1115, %v2515
        %v2601 = vsub.f32 %v1117, %v2517
        %v2602 = vsub.f32 %v1119, %v2519
        %v2603 = vsub.f32 %v1121, %v2521
        %v2604 = vsub.f32 %v1123, %v2523
        %v2605 = vsub.f32 %v1125, %v2525
        %v2606 = vsub.f32 %v1223, %v2527
        %v2607 = vsub.f32 %v1225, %v2529
        %v2608 = vsub.f32 %v1227, %v2531
        %v2609 = vsub.f32 %v1229, %v2533
        %v2610 = vsub.f32 %v1231, %v2535
        %v2611 = vsub.f32 %v1233, %v2537
        %v2612 = vsub.f32 %v1235, %v2539
        %v2613 = vsub.f32 %v1237, %v2541
        %v2614 = vsub.f32 %v1335, %v2543
        %v2615 = vsub.f32 %v1337, %v2545
        %v2616 = vsub.f32 %v1339, %v2547
        %v2617 = vsub.f32 %v1341, %v2549
        %v2618 = vsub.f32 %v1343, %v2551
        %v2619 = vsub.f32 %v1345, %v2553
        %v2620 = vsub.f32 %v1347, %v2555
        %v2621 = vsub.f32 %v1349, %v2557
        %v2622 = vmul.f32 %v2590, 0.5
        %v2623 = vmul.f32 %v2591, 0.5
        %v2624 = vmul.f32 %v2592, 0.5
        %v2625 = vmul.f32 %v2593, 0.5
        %v2626 = vmul.f32 %v2594, 0.5
        %v2627 = vmul.f32 %v2595, 0.5
        %v2628 = vmul.f32 %v2596, 0.5
        %v2629 = vmul.f32 %v2597, 0.5
        %v2630 = vmul.f32 %v2598, 0.5
        %v2631 = vmul.f32 %v2599, 0.5
        %v2632 = vmul.f32 %v2600, 0.5
        %v2633 = vmul.f32 %v2601, 0.5
        %v2634 = vmul.f32 %v2602, 0.5
        %v2635 = vmul.f32 %v2603, 0.5
        %v2636 = vmul.f32 %v2604, 0.5
        %v2637 = vmul.f32 %v2605, 0.5
        %v2638 = vmul.f32 %v2606, 0.5
        %v2639 = vmul.f32 %v2607, 0.5
        %v2640 = vmul.f32 %v2608, 0.5
        %v2641 = vmul.f32 %v2609, 0.5
        %v2642 = vmul.f32 %v2610, 0.5
        %v2643 = vmul.f32 %v2611, 0.5
        %v2644 = vmul.f32 %v2612, 0.5
        %v2645 = vmul.f32 %v2613, 0.5
        %v2646 = vmul.f32 %v2614, 0.5
        %v2647 = vmul.f32 %v2615, 0.5
        %v2648 = vmul.f32 %v2616, 0.5
        %v2649 = vmul.f32 %v2617, 0.5
        %v2650 = vmul.f32 %v2618, 0.5
        %v2651 = vmul.f32 %v2619, 0.5
        %v2652 = vmul.f32 %v2620, 0.5
        %v2653 = vmul.f32 %v2621, 0.5
        %2686 = vset.pattern.permute.xlu0 1
        %2687 = vperm.xlu0 %2686, %v2622
        %v2688 = vpop.permute.xlu0 %2687
        %2689 = vset.pattern.permute.xlu0 1
        %2690 = vperm.xlu0 %2689, %v2623
        %v2691 = vpop.permute.xlu0 %2690
        %2692 = vset.pattern.permute.xlu0 1
        %2693 = vperm.xlu0 %2692, %v2624
        %v2694 = vpop.permute.xlu0 %2693
        %2695 = vset.pattern.permute.xlu0 1
        %2696 = vperm.xlu0 %2695, %v2625
        %v2697 = vpop.permute.xlu0 %2696
        %2698 = vset.pattern.permute.xlu0 1
        %2699 = vperm.xlu0 %2698, %v2626
        %v2700 = vpop.permute.xlu0 %2699
        %2701 = vset.pattern.permute.xlu0 1
        %2702 = vperm.xlu0 %2701, %v2627
        %v2703 = vpop.permute.xlu0 %2702
        %2704 = vset.pattern.permute.xlu0 1
        %2705 = vperm.xlu0 %2704, %v2628
        %v2706 = vpop.permute.xlu0 %2705
        %2707 = vset.pattern.permute.xlu0 1
        %2708 = vperm.xlu0 %2707, %v2629
        %v2709 = vpop.permute.xlu0 %2708
        %2710 = vset.pattern.permute.xlu0 1
        %2711 = vperm.xlu0 %2710, %v2630
        %v2712 = vpop.permute.xlu0 %2711
        %2713 = vset.pattern.permute.xlu0 1
        %2714 = vperm.xlu0 %2713, %v2631
        %v2715 = vpop.permute.xlu0 %2714
        %2716 = vset.pattern.permute.xlu0 1
        %2717 = vperm.xlu0 %2716, %v2632
        %v2718 = vpop.permute.xlu0 %2717
        %2719 = vset.pattern.permute.xlu0 1
        %2720 = vperm.xlu0 %2719, %v2633
        %v2721 = vpop.permute.xlu0 %2720
        %2722 = vset.pattern.permute.xlu0 1
        %2723 = vperm.xlu0 %2722, %v2634
        %v2724 = vpop.permute.xlu0 %2723
        %2725 = vset.pattern.permute.xlu0 1
        %2726 = vperm.xlu0 %2725, %v2635
        %v2727 = vpop.permute.xlu0 %2726
        %2728 = vset.pattern.permute.xlu0 1
        %2729 = vperm.xlu0 %2728, %v2636
        %v2730 = vpop.permute.xlu0 %2729
        %2731 = vset.pattern.permute.xlu0 1
        %2732 = vperm.xlu0 %2731, %v2637
        %v2733 = vpop.permute.xlu0 %2732
        %2734 = vset.pattern.permute.xlu0 1
        %2735 = vperm.xlu0 %2734, %v2638
        %v2736 = vpop.permute.xlu0 %2735
        %2737 = vset.pattern.permute.xlu0 1
        %2738 = vperm.xlu0 %2737, %v2639
        %v2739 = vpop.permute.xlu0 %2738
        %2740 = vset.pattern.permute.xlu0 1
        %2741 = vperm.xlu0 %2740, %v2640
        %v2742 = vpop.permute.xlu0 %2741
        %2743 = vset.pattern.permute.xlu0 1
        %2744 = vperm.xlu0 %2743, %v2641
        %v2745 = vpop.permute.xlu0 %2744
        %2746 = vset.pattern.permute.xlu0 1
        %2747 = vperm.xlu0 %2746, %v2642
        %v2748 = vpop.permute.xlu0 %2747
        %2749 = vset.pattern.permute.xlu0 1
        %2750 = vperm.xlu0 %2749, %v2643
        %v2751 = vpop.permute.xlu0 %2750
        %2752 = vset.pattern.permute.xlu0 1
        %2753 = vperm.xlu0 %2752, %v2644
        %v2754 = vpop.permute.xlu0 %2753
        %2755 = vset.pattern.permute.xlu0 1
        %2756 = vperm.xlu0 %2755, %v2645
        %v2757 = vpop.permute.xlu0 %2756
        %2758 = vset.pattern.permute.xlu0 1
        %2759 = vperm.xlu0 %2758, %v2646
        %v2760 = vpop.permute.xlu0 %2759
        %2761 = vset.pattern.permute.xlu0 1
        %2762 = vperm.xlu0 %2761, %v2647
        %v2763 = vpop.permute.xlu0 %2762
        %2764 = vset.pattern.permute.xlu0 1
        %2765 = vperm.xlu0 %2764, %v2648
        %v2766 = vpop.permute.xlu0 %2765
        %2767 = vset.pattern.permute.xlu0 1
        %2768 = vperm.xlu0 %2767, %v2649
        %v2769 = vpop.permute.xlu0 %2768
        %2770 = vset.pattern.permute.xlu0 1
        %2771 = vperm.xlu0 %2770, %v2650
        %v2772 = vpop.permute.xlu0 %2771
        %2773 = vset.pattern.permute.xlu0 1
        %2774 = vperm.xlu0 %2773, %v2651
        %v2775 = vpop.permute.xlu0 %2774
        %2776 = vset.pattern.permute.xlu0 1
        %2777 = vperm.xlu0 %2776, %v2652
        %v2778 = vpop.permute.xlu0 %2777
        %2779 = vset.pattern.permute.xlu0 1
        %2780 = vperm.xlu0 %2779, %v2653
        %v2781 = vpop.permute.xlu0 %2780
        %v2782 = vperm.slane %v2688, %v1671
        %v2783 = vperm.slane %v2691, %v1671
        %v2784 = vperm.slane %v2694, %v1671
        %v2785 = vperm.slane %v2697, %v1671
        %v2786 = vperm.slane %v2700, %v1671
        %v2787 = vperm.slane %v2703, %v1671
        %v2788 = vperm.slane %v2706, %v1671
        %v2789 = vperm.slane %v2709, %v1671
        %v2790 = vperm.slane %v2712, %v1671
        %v2791 = vperm.slane %v2715, %v1671
        %v2792 = vperm.slane %v2718, %v1671
        %v2793 = vperm.slane %v2721, %v1671
        %v2794 = vperm.slane %v2724, %v1671
        %v2795 = vperm.slane %v2727, %v1671
        %v2796 = vperm.slane %v2730, %v1671
        %v2797 = vperm.slane %v2733, %v1671
        %v2798 = vperm.slane %v2736, %v1671
        %v2799 = vperm.slane %v2739, %v1671
        %v2800 = vperm.slane %v2742, %v1671
        %v2801 = vperm.slane %v2745, %v1671
        %v2802 = vperm.slane %v2748, %v1671
        %v2803 = vperm.slane %v2751, %v1671
        %v2804 = vperm.slane %v2754, %v1671
        %v2805 = vperm.slane %v2757, %v1671
        %v2806 = vperm.slane %v2760, %v1671
        %v2807 = vperm.slane %v2763, %v1671
        %v2808 = vperm.slane %v2766, %v1671
        %v2809 = vperm.slane %v2769, %v1671
        %v2810 = vperm.slane %v2772, %v1671
        %v2811 = vperm.slane %v2775, %v1671
        %v2812 = vperm.slane %v2778, %v1671
        %v2813 = vperm.slane %v2781, %v1671
        %v2814 = vsel %vm1704, %v2783, %v2782
        %v2815 = vsel %vm1706, %v2784, %v2814
        %v2816 = vsel %vm1708, %v2785, %v2815
        %v2817 = vsel %vm1710, %v2786, %v2816
        %v2818 = vsel %vm1712, %v2787, %v2817
        %v2819 = vsel %vm1714, %v2788, %v2818
        %v2820 = vsel %vm1716, %v2789, %v2819
        %v2821 = vsel %vm1704, %v2791, %v2790
        %v2822 = vsel %vm1706, %v2792, %v2821
        %v2823 = vsel %vm1708, %v2793, %v2822
        %v2824 = vsel %vm1710, %v2794, %v2823
        %v2825 = vsel %vm1712, %v2795, %v2824
        %v2826 = vsel %vm1714, %v2796, %v2825
        %v2827 = vsel %vm1716, %v2797, %v2826
        %v2828 = vsel %vm1704, %v2799, %v2798
        %v2829 = vsel %vm1706, %v2800, %v2828
        %v2830 = vsel %vm1708, %v2801, %v2829
        %v2831 = vsel %vm1710, %v2802, %v2830
        %v2832 = vsel %vm1712, %v2803, %v2831
        %v2833 = vsel %vm1714, %v2804, %v2832
        %v2834 = vsel %vm1716, %v2805, %v2833
        %v2835 = vsel %vm1704, %v2807, %v2806
        %v2836 = vsel %vm1706, %v2808, %v2835
        %v2837 = vsel %vm1708, %v2809, %v2836
        %v2838 = vsel %vm1710, %v2810, %v2837
        %v2839 = vsel %vm1712, %v2811, %v2838
        %v2840 = vsel %vm1714, %v2812, %v2839
        %v2841 = vsel %vm1716, %v2813, %v2840
        %s2846 = scalar_lea.vmem %s166, 96 [#allocation5]
        %2847 = vst.msk [vmem:[%s2846] sm:$0xff] %vm1743, %v2820
        %2848 = vst.msk [vmem:[%s2846 + $0x8] sm:$0xff] %vm1743, %v2827
        %2849 = vst.msk [vmem:[%s2846 + $0x10] sm:$0xff] %vm1743, %v2834
        %2850 = vst.msk [vmem:[%s2846 + $0x18] sm:$0xff] %vm1743, %v2841
        %s2851 = sand.u32 %s79, 1
        %s2852 = scalar_lea.sflag [#allocation4], %s2851
        %s2853 = sand.u32 %s79, 1
        %s2854 = smul.addr %s2853, 128
        %s2855 = scalar_lea.vmem [#allocation5], %s2854
        // Predicated region
        $region29: #{tpu_custom_call.1} parent=23 // pred_check
          %p2856 = pneg %p89
        $region30: #{tpu_custom_call.1} parent=23 // pred_check_branch
          %2858 = sbr.rel (%p2856) target = $region32
        $region31: #{tpu_custom_call.1} parent=23 // pred_region
          %s2859 = smul.u32 4, %s24
          %2861 = vsyncadd %s2852, 0
          %s2862 = sadd.s32 %s25, %s2859
          %s2863 = smul.addr %s23, 16
          %s2864 = sadd.s32 %s2862, %s2863
          %s2865 = smul.addr %s2864, 8
          %s2866 = scalar_lea.hbm %s1, %s2865
          %s2867 = sshll.u32 %s2855, 4
          %s2868 = int_to_ptr.vmem [resolvable:$true] %s2867
          %s2869 = sshll.u32 %s2866, 4
          %s2870 = int_to_ptr.hbm [resolvable:$true] %s2869
          %2875 = dma.vmem_to_hbm [thread:$0]  %s2868, 2048, %s2870, %s2852, 128, 128, 8
        $region32: #{tpu_custom_call.1} parent=23 // pred_fallthru
          _
      $region24: #{tpu_custom_call.1} parent=5 // pred_fallthru
        _
      %p2876 = scmp.le.s32.totalorder 2, %s13
      // Predicated region
      $region33: #{tpu_custom_call.1} parent=5 // pred_check
        %p2877 = pneg %p2876
      $region34: #{tpu_custom_call.1} parent=5 // pred_check_branch
        %2879 = sbr.rel (%p2877) target = $region36
      $region35: #{tpu_custom_call.1} parent=5 // pred_region
        %s2880 = ssub.s32 %s13, 2
        // Predicated region
        $region37: #{tpu_custom_call.1} parent=35 // pred_check
          %p2881 = pneg %p95
        $region38: #{tpu_custom_call.1} parent=35 // pred_check_branch
          %2883 = sbr.rel (%p2881) target = $region40
        $region39: #{tpu_custom_call.1} parent=35 // pred_region
          %s2884 = sand.u32 %s80, 1
          %s2885 = scalar_lea.sflag [#allocation4], %s2884
          %s2886 = sand.u32 %s80, 1
          %s2887 = smul.addr %s2886, 128
          %s2888 = scalar_lea.vmem [#allocation5], %s2887
          %2890 = dma.done %s2885, 2048
        $region40: #{tpu_custom_call.1} parent=35 // pred_fallthru
          _
      $region36: #{tpu_custom_call.1} parent=5 // pred_fallthru
        _
    $region6: #{tpu_custom_call.1} parent=1 // loop_footer
      %s17 = sadd.s32 1, %s13
    $region7: #{tpu_custom_call.1} parent=1 // loop_footer_branch
      %12 = sbr.rel target = $region3
    $region8: #{tpu_custom_call.1} parent=1 // loop_exit
      _
    %2891 = vsyncpa [#allocation3], 1
    %s2892 = scalar_lea.sflag [#allocation3], 1
    %2893 = vsyncpa %s2892, 1
    %2894 = vsyncpa [#allocation4], 1
    %s2895 = scalar_lea.sflag [#allocation4], 1
    %2896 = vsyncpa %s2895, 1

</llo_original>
